<compile_context>
chip_gen: v6e
topology: v6e:2x2x1
jax: 0.10.0
libtpu: 0.0.40
codegen_flags: <defaults>
</compile_context>

<pallas_src>
import functools

import jax
import jax.numpy as jnp
from jax.experimental import pallas as pl
from jax.experimental.pallas import tpu as pltpu

EPS = 1e-5


def _round_up(x, m):
    return ((x + m - 1) // m) * m


# -----------------------------------------------------------------------------
# Banded weight matrices: (3,3,Cin,Cout) HWIO -> (3, W*Cin, W*Cout).
# M_dy[(w+dx-1)*Cin+ci, w*Cout+co] = W[dy, dx, ci, co]; "SAME" boundaries fall
# out of the band structure (no entry for out-of-range w+dx-1).
# -----------------------------------------------------------------------------
def band_matrices(w_hwio, W):
    kh, kw, cin, cout = w_hwio.shape
    mats = []
    for dy in range(kh):
        m = jnp.zeros((W * cin, W * cout), jnp.float32)
        for dx in range(kw):
            shift = jnp.eye(W, k=1 - dx, dtype=jnp.float32)  # S[wi,w]=1 iff wi=w+dx-1
            m = m + jnp.kron(shift, w_hwio[dy, dx].astype(jnp.float32))
        mats.append(m)
    return jnp.stack(mats)  # (3, W*Cin, W*Cout)


# -----------------------------------------------------------------------------
# Kernel 1: per-image 3x3 "same" conv on the channel-packed layout, with the
#           previous layer's folded BatchNorm+ReLU optionally fused into the
#           input path, emitting per-image channel partial sums for BN stats.
# -----------------------------------------------------------------------------
def conv3x3_kernel(x_ref, m_ref, scale_ref, shift_ref,
                   y_ref, sum_ref, ssq_ref,
                   xpad_ref, *, apply_input_bn_relu):
    # x_ref     : (H, W*Cin)        one packed image (batch dim squeezed)
    # m_ref     : (3, W*Cin, W*Cout) banded weights, one slab per dy
    # scale/shift_ref : (1, W*Cin)  folded BN affine of the previous layer
    # y_ref     : (H, W*Cout)       pre-BN conv output (lane-dense)
    # sum/ssq_ref : (1, W*Cout)     per-image partial stats
    # xpad_ref  : VMEM (round_up(H+2,8), W*Cin) row-halo scratch
    H, Wo = y_ref.shape
    Wi = x_ref.shape[-1]

    x = x_ref[...]
    if apply_input_bn_relu:
        # Fused BatchNorm (folded to per-lane scale/shift) + ReLU.
        x = jnp.maximum(x * scale_ref[...] + shift_ref[...], 0.0)

    # Row halo: zero ONLY the two rows the shifted reads touch (no full fill).
    xpad_ref[0:1, :] = jnp.zeros((1, Wi), jnp.float32)
    xpad_ref[H + 1:H + 2, :] = jnp.zeros((1, Wi), jnp.float32)
    xpad_ref[1:H + 1, :] = x

    # 3 accumulating MXU matmuls, one per dy row offset.
    acc = jnp.dot(xpad_ref[0:H, :], m_ref[0],
                  preferred_element_type=jnp.float32)
    acc = acc + jnp.dot(xpad_ref[1:H + 1, :], m_ref[1],
                        preferred_element_type=jnp.float32)
    acc = acc + jnp.dot(xpad_ref[2:H + 2, :], m_ref[2],
                        preferred_element_type=jnp.float32)

    y_ref[...] = acc
    # Per-image partials (sublane reduce) -> batch grid axis stays "parallel".
    sum_ref[...] = jnp.sum(acc, axis=0, keepdims=True)
    ssq_ref[...] = jnp.sum(acc * acc, axis=0, keepdims=True)


def conv3x3(x_packed, m_stack, scale_row, shift_row, *, apply_input_bn_relu):
    N, H, Wi = x_packed.shape
    _, _, Wo = m_stack.shape
    hp = _round_up(H + 2, 8)

    kernel = functools.partial(conv3x3_kernel,
                               apply_input_bn_relu=apply_input_bn_relu)
    y, s, q = pl.pallas_call(
        kernel,
        out_shape=(
            jax.ShapeDtypeStruct((N, H, Wo), jnp.float32),
            jax.ShapeDtypeStruct((N, 1, Wo), jnp.float32),
            jax.ShapeDtypeStruct((N, 1, Wo), jnp.float32),
        ),
        grid_spec=pltpu.PrefetchScalarGridSpec(
            num_scalar_prefetch=0,
            grid=(N,),
            in_specs=[
                pl.BlockSpec((None, H, Wi), lambda n: (n, 0, 0)),
                pl.BlockSpec((3, Wi, Wo), lambda n: (0, 0, 0)),
                pl.BlockSpec((1, Wi), lambda n: (0, 0)),
                pl.BlockSpec((1, Wi), lambda n: (0, 0)),
            ],
            out_specs=(
                pl.BlockSpec((None, H, Wo), lambda n: (n, 0, 0)),
                pl.BlockSpec((None, 1, Wo), lambda n: (n, 0, 0)),
                pl.BlockSpec((None, 1, Wo), lambda n: (n, 0, 0)),
            ),
            scratch_shapes=[pltpu.VMEM((hp, Wi), jnp.float32)],
        ),
        compiler_params=pltpu.CompilerParams(
            dimension_semantics=("parallel",)),
    )(x_packed, m_stack, scale_row, shift_row)
    return y, s.reshape(N, Wo), q.reshape(N, Wo)


# -----------------------------------------------------------------------------
# Kernel 2: final fused per-channel affine (folded BatchNorm) + ReLU,
#           lane-dense, 8-multiple row tiles over all N*H rows.
# -----------------------------------------------------------------------------
def bn_relu_kernel(y_ref, scale_ref, shift_ref, out_ref):
    out_ref[...] = jnp.maximum(y_ref[...] * scale_ref[...] + shift_ref[...], 0.0)


def _row_tile(rows, cap=2048):
    assert rows % 8 == 0
    t = min(rows, cap)
    t -= t % 8
    while rows % t:
        t -= 8
    return t


def bn_relu(y_flat, scale_row, shift_row):
    rows, c = y_flat.shape
    tile = _row_tile(rows)
    return pl.pallas_call(
        bn_relu_kernel,
        out_shape=jax.ShapeDtypeStruct((rows, c), jnp.float32),
        grid_spec=pltpu.PrefetchScalarGridSpec(
            num_scalar_prefetch=0,
            grid=(rows // tile,),
            in_specs=[
                pl.BlockSpec((tile, c), lambda i: (i, 0)),
                pl.BlockSpec((1, c), lambda i: (0, 0)),
                pl.BlockSpec((1, c), lambda i: (0, 0)),
            ],
            out_specs=pl.BlockSpec((tile, c), lambda i: (i, 0)),
        ),
        compiler_params=pltpu.CompilerParams(
            dimension_semantics=("parallel",)),
    )(y_flat, scale_row, shift_row)


# -----------------------------------------------------------------------------
# DoubleConv forward
# -----------------------------------------------------------------------------
def _bn_scale_shift(s, q, count, gamma, beta, W, cout):
    # s, q: (N, W*Cout) per-image sums over H; reduce over N and W here.
    s_c = jnp.sum(s.reshape(-1, W, cout), axis=(0, 1))
    q_c = jnp.sum(q.reshape(-1, W, cout), axis=(0, 1))
    mean = s_c / count
    var = jnp.maximum(q_c / count - mean * mean, 0.0)
    scale = gamma * jax.lax.rsqrt(var + EPS)
    shift = beta - mean * scale
    return scale, shift


def _tile_lanes(v, W):
    # per-channel (C,) -> per-lane (1, W*C) for the packed (w, c) lane layout.
    return jnp.tile(v, W).reshape(1, -1)


@jax.jit
def double_conv_forward(x_nchw, params):
    N, Cin, H, W = x_nchw.shape
    Cout = params["w1"].shape[-1]
    count = jnp.float32(N * H * W)

    # NCHW -> NHWC -> packed (N, H, W*Cin); the reshape is metadata-only.
    x = jnp.transpose(x_nchw, (0, 2, 3, 1)).reshape(N, H, W * Cin)

    m1 = band_matrices(params["w1"], W)   # (3, W*Cin,  W*Cout)
    m2 = band_matrices(params["w2"], W)   # (3, W*Cout, W*Cout)
    # Conv biases dropped: per-channel constants cancel exactly under the
    # training-mode BatchNorm mean subtraction that follows each conv.

    # ---- layer 1 conv (no input BN/ReLU) -----------------------------------
    ones1 = jnp.ones((1, W * Cin), jnp.float32)
    zeros1 = jnp.zeros((1, W * Cin), jnp.float32)
    y1, s1, q1 = conv3x3(x, m1, ones1, zeros1, apply_input_bn_relu=False)
    scale1, shift1 = _bn_scale_shift(s1, q1, count,
                                     params["g1"], params["be1"], W, Cout)

    # ---- layer 2 conv, layer-1 BN+ReLU fused into its input path -----------
    y2, s2, q2 = conv3x3(y1, m2,
                         _tile_lanes(scale1, W), _tile_lanes(shift1, W),
                         apply_input_bn_relu=True)
    scale2, shift2 = _bn_scale_shift(s2, q2, count,
                                     params["g2"], params["be2"], W, Cout)

    # ---- final BN+ReLU (lane-dense elementwise pass over all N*H rows) -----
    out = bn_relu(y2.reshape(N * H, W * Cout),
                  _tile_lanes(scale2, W), _tile_lanes(shift2, W))
    # TODO(synk): fold this NHWC->NCHW transpose into the bn_relu out_spec
    # (emit (Cout, H*W) per image) once the in-kernel relayout is validated.
    out = out.reshape(N, H, W, Cout)
    return jnp.transpose(out, (0, 3, 1, 2))          # NHWC -> NCHW


# -----------------------------------------------------------------------------
# Pure-JAX reference (PyTorch semantics incl. conv bias, for a self-check)
# -----------------------------------------------------------------------------
def ref_block(x_nhwc, w_hwio, b, gamma, beta):
    y = jax.lax.conv_general_dilated(
        x_nhwc, w_hwio, window_strides=(1, 1), padding="SAME",
        dimension_numbers=("NHWC", "HWIO", "NHWC")) + b
    mean = jnp.mean(y, axis=(0, 1, 2))
    var = jnp.mean((y - mean) ** 2, axis=(0, 1, 2))
    return jnp.maximum((y - mean) * jax.lax.rsqrt(var + EPS) * gamma + beta, 0.0)


def ref_forward(x_nchw, p):
    x = jnp.transpose(x_nchw, (0, 2, 3, 1))
    x = ref_block(x, p["w1"], p["b1"], p["g1"], p["be1"])
    x = ref_block(x, p["w2"], p["b2"], p["g2"], p["be2"])
    return jnp.transpose(x, (0, 3, 1, 2))


if __name__ == "__main__":
    key = jax.random.PRNGKey(0)
    N, Cin, Cout, H, W = 2, 4, 8, 16, 16

    k_x, k_w1, k_b1, k_w2, k_b2 = jax.random.split(key, 5)
    x = jax.random.normal(k_x, (N, Cin, H, W), jnp.float32)

    params = {
        # weights stored HWIO (kernel layout); bias per output channel.
        "w1": jax.random.normal(k_w1, (3, 3, Cin, Cout), jnp.float32) * 0.1,
        "b1": jax.random.normal(k_b1, (Cout,), jnp.float32) * 0.1,
        "g1": jnp.ones((Cout,), jnp.float32),       # BatchNorm gamma init
        "be1": jnp.zeros((Cout,), jnp.float32),     # BatchNorm beta init
        "w2": jax.random.normal(k_w2, (3, 3, Cout, Cout), jnp.float32) * 0.1,
        "b2": jax.random.normal(k_b2, (Cout,), jnp.float32) * 0.1,
        "g2": jnp.ones((Cout,), jnp.float32),
        "be2": jnp.zeros((Cout,), jnp.float32),
    }

    out = jax.block_until_ready(double_conv_forward(x, params))
    ref = jax.block_until_ready(ref_forward(x, params))

    assert out.shape == (N, Cout, H, W), out.shape
    assert jnp.allclose(out, ref, atol=1e-4, rtol=1e-4), float(
        jnp.max(jnp.abs(out - ref)))
    print("KERNEL_OK")
</pallas_src>

<mosaic_0001>
module attributes {stable_mosaic.version = 11 : i64} {
  func.func @conv3x3_kernel(%arg0: i32, %arg1: memref<1x16x64xf32, #tpu.memory_space<vmem>>, %arg2: memref<3x64x128xf32, #tpu.memory_space<vmem>>, %arg3: memref<1x64xf32, #tpu.memory_space<vmem>>, %arg4: memref<1x64xf32, #tpu.memory_space<vmem>>, %arg5: memref<1x16x128xf32, #tpu.memory_space<vmem>>, %arg6: memref<1x1x128xf32, #tpu.memory_space<vmem>>, %arg7: memref<1x1x128xf32, #tpu.memory_space<vmem>>, %arg8: memref<24x64xf32, #tpu.memory_space<vmem>>) attributes {dimension_semantics = [#tpu.dimension_semantics<parallel>], iteration_bounds = array<i64: 2>, scalar_prefetch = 0 : i64, scratch_operands = 1 : i64, tpu.core_type = #tpu.core_type<tc>, window_params = [{transform_indices = @transform_0, window_bounds = array<i64: 1, 16, 64>}, {pipeline_mode = #tpu.pipeline_mode<synchronous>, transform_indices = @transform_1, window_bounds = array<i64: 3, 64, 128>}, {pipeline_mode = #tpu.pipeline_mode<synchronous>, transform_indices = @transform_2, window_bounds = array<i64: 1, 64>}, {pipeline_mode = #tpu.pipeline_mode<synchronous>, transform_indices = @transform_3, window_bounds = array<i64: 1, 64>}, {transform_indices = @transform_4, window_bounds = array<i64: 1, 16, 128>}, {transform_indices = @transform_5, window_bounds = array<i64: 1, 1, 128>}, {transform_indices = @transform_6, window_bounds = array<i64: 1, 1, 128>}]} {
    %c0 = arith.constant 0 : index
    %c0_0 = arith.constant 0 : index
    %c0_1 = arith.constant 0 : index
    %0 = vector.load %arg1[%c0, %c0_0, %c0_1] : memref<1x16x64xf32, #tpu.memory_space<vmem>>, vector<1x16x64xf32>
    %1 = vector.shape_cast %0 : vector<1x16x64xf32> to vector<16x64xf32>
    %cst = arith.constant 0.000000e+00 : f32
    %2 = vector.broadcast %cst : f32 to vector<1x64xf32>
    %c0_2 = arith.constant 0 : index
    %c0_3 = arith.constant 0 : index
    %3 = vector.load %arg8[%c0_2, %c0_3] : memref<24x64xf32, #tpu.memory_space<vmem>>, vector<1x64xf32>
    tpu.vector_store %arg8[%c0_2, %c0_3], %2 {strides = array<i32>} : memref<24x64xf32, #tpu.memory_space<vmem>>, vector<1x64xf32>,
    %cst_4 = arith.constant 0.000000e+00 : f32
    %4 = vector.broadcast %cst_4 : f32 to vector<1x64xf32>
    %c17 = arith.constant 17 : index
    %c0_5 = arith.constant 0 : index
    %5 = vector.load %arg8[%c17, %c0_5] : memref<24x64xf32, #tpu.memory_space<vmem>>, vector<1x64xf32>
    tpu.vector_store %arg8[%c17, %c0_5], %4 {strides = array<i32>} : memref<24x64xf32, #tpu.memory_space<vmem>>, vector<1x64xf32>,
    %c1 = arith.constant 1 : index
    %c0_6 = arith.constant 0 : index
    %6 = vector.load %arg8[%c1, %c0_6] : memref<24x64xf32, #tpu.memory_space<vmem>>, vector<16x64xf32>
    tpu.vector_store %arg8[%c1, %c0_6], %1 {strides = array<i32>} : memref<24x64xf32, #tpu.memory_space<vmem>>, vector<16x64xf32>,
    %c0_7 = arith.constant 0 : index
    %c0_8 = arith.constant 0 : index
    %7 = vector.load %arg8[%c0_7, %c0_8] : memref<24x64xf32, #tpu.memory_space<vmem>>, vector<16x64xf32>
    %c0_9 = arith.constant 0 : index
    %c0_10 = arith.constant 0 : index
    %c0_11 = arith.constant 0 : index
    %8 = vector.load %arg2[%c0_9, %c0_10, %c0_11] : memref<3x64x128xf32, #tpu.memory_space<vmem>>, vector<1x64x128xf32>
    %9 = vector.shape_cast %8 : vector<1x64x128xf32> to vector<64x128xf32>
    %cst_12 = arith.constant dense<0.000000e+00> : vector<16x128xf32>
    %10 = tpu.matmul %7, %9, %cst_12 {dimension_numbers = #tpu.dot_dimension_numbers<[1], [0], [0], [1], [0, 0, 1, 1], [], []>} : vector<16x64xf32>, vector<64x128xf32>, vector<16x128xf32> -> vector<16x128xf32>
    %c1_13 = arith.constant 1 : index
    %c0_14 = arith.constant 0 : index
    %11 = vector.load %arg8[%c1_13, %c0_14] : memref<24x64xf32, #tpu.memory_space<vmem>>, vector<16x64xf32>
    %c1_15 = arith.constant 1 : index
    %c0_16 = arith.constant 0 : index
    %c0_17 = arith.constant 0 : index
    %12 = vector.load %arg2[%c1_15, %c0_16, %c0_17] : memref<3x64x128xf32, #tpu.memory_space<vmem>>, vector<1x64x128xf32>
    %13 = vector.shape_cast %12 : vector<1x64x128xf32> to vector<64x128xf32>
    %cst_18 = arith.constant dense<0.000000e+00> : vector<16x128xf32>
    %14 = tpu.matmul %11, %13, %cst_18 {dimension_numbers = #tpu.dot_dimension_numbers<[1], [0], [0], [1], [0, 0, 1, 1], [], []>} : vector<16x64xf32>, vector<64x128xf32>, vector<16x128xf32> -> vector<16x128xf32>
    %15 = arith.addf %10, %14 : vector<16x128xf32>
    %c2 = arith.constant 2 : index
    %c0_19 = arith.constant 0 : index
    %16 = vector.load %arg8[%c2, %c0_19] : memref<24x64xf32, #tpu.memory_space<vmem>>, vector<16x64xf32>
    %c2_20 = arith.constant 2 : index
    %c0_21 = arith.constant 0 : index
    %c0_22 = arith.constant 0 : index
    %17 = vector.load %arg2[%c2_20, %c0_21, %c0_22] : memref<3x64x128xf32, #tpu.memory_space<vmem>>, vector<1x64x128xf32>
    %18 = vector.shape_cast %17 : vector<1x64x128xf32> to vector<64x128xf32>
    %cst_23 = arith.constant dense<0.000000e+00> : vector<16x128xf32>
    %19 = tpu.matmul %16, %18, %cst_23 {dimension_numbers = #tpu.dot_dimension_numbers<[1], [0], [0], [1], [0, 0, 1, 1], [], []>} : vector<16x64xf32>, vector<64x128xf32>, vector<16x128xf32> -> vector<16x128xf32>
    %20 = arith.addf %15, %19 : vector<16x128xf32>
    %c0_24 = arith.constant 0 : index
    %c0_25 = arith.constant 0 : index
    %c0_26 = arith.constant 0 : index
    %21 = vector.load %arg5[%c0_24, %c0_25, %c0_26] : memref<1x16x128xf32, #tpu.memory_space<vmem>>, vector<1x16x128xf32>
    %22 = vector.shape_cast %21 : vector<1x16x128xf32> to vector<16x128xf32>
    %23 = vector.shape_cast %20 : vector<16x128xf32> to vector<1x16x128xf32>
    tpu.vector_store %arg5[%c0_24, %c0_25, %c0_26], %23 {strides = array<i32>} : memref<1x16x128xf32, #tpu.memory_space<vmem>>, vector<1x16x128xf32>,
    %cst_27 = arith.constant dense<0.000000e+00> : vector<128xf32>
    %24 = vector.multi_reduction <add>, %20, %cst_27 [0] : vector<16x128xf32> to vector<128xf32>
    %25 = vector.shape_cast %24 : vector<128xf32> to vector<1x128xf32>
    %c0_28 = arith.constant 0 : index
    %c0_29 = arith.constant 0 : index
    %c0_30 = arith.constant 0 : index
    %26 = vector.load %arg6[%c0_28, %c0_29, %c0_30] : memref<1x1x128xf32, #tpu.memory_space<vmem>>, vector<1x1x128xf32>
    %27 = vector.shape_cast %26 : vector<1x1x128xf32> to vector<1x128xf32>
    %28 = vector.shape_cast %25 : vector<1x128xf32> to vector<1x1x128xf32>
    tpu.vector_store %arg6[%c0_28, %c0_29, %c0_30], %28 {strides = array<i32>} : memref<1x1x128xf32, #tpu.memory_space<vmem>>, vector<1x1x128xf32>,
    %29 = arith.mulf %20, %20 : vector<16x128xf32>
    %cst_31 = arith.constant dense<0.000000e+00> : vector<128xf32>
    %30 = vector.multi_reduction <add>, %29, %cst_31 [0] : vector<16x128xf32> to vector<128xf32>
    %31 = vector.shape_cast %30 : vector<128xf32> to vector<1x128xf32>
    %c0_32 = arith.constant 0 : index
    %c0_33 = arith.constant 0 : index
    %c0_34 = arith.constant 0 : index
    %32 = vector.load %arg7[%c0_32, %c0_33, %c0_34] : memref<1x1x128xf32, #tpu.memory_space<vmem>>, vector<1x1x128xf32>
    %33 = vector.shape_cast %32 : vector<1x1x128xf32> to vector<1x128xf32>
    %34 = vector.shape_cast %31 : vector<1x128xf32> to vector<1x1x128xf32>
    tpu.vector_store %arg7[%c0_32, %c0_33, %c0_34], %34 {strides = array<i32>} : memref<1x1x128xf32, #tpu.memory_space<vmem>>, vector<1x1x128xf32>,
    return
  }
  func.func @transform_0(%arg0: i32) -> (i32, i32, i32) {
    %c0_i32 = arith.constant 0 : i32
    %c0_i32_0 = arith.constant 0 : i32
    %c0_i32_1 = arith.constant 0 : i32
    return %arg0, %c0_i32, %c0_i32_0 : i32, i32, i32
  }
  func.func @transform_1(%arg0: i32) -> (i32, i32, i32) {
    %c0_i32 = arith.constant 0 : i32
    %c0_i32_0 = arith.constant 0 : i32
    %c0_i32_1 = arith.constant 0 : i32
    %c0_i32_2 = arith.constant 0 : i32
    return %c0_i32, %c0_i32_0, %c0_i32_1 : i32, i32, i32
  }
  func.func @transform_2(%arg0: i32) -> (i32, i32) {
    %c0_i32 = arith.constant 0 : i32
    %c0_i32_0 = arith.constant 0 : i32
    %c0_i32_1 = arith.constant 0 : i32
    return %c0_i32, %c0_i32_0 : i32, i32
  }
  func.func @transform_3(%arg0: i32) -> (i32, i32) {
    %c0_i32 = arith.constant 0 : i32
    %c0_i32_0 = arith.constant 0 : i32
    %c0_i32_1 = arith.constant 0 : i32
    return %c0_i32, %c0_i32_0 : i32, i32
  }
  func.func @transform_4(%arg0: i32) -> (i32, i32, i32) {
    %c0_i32 = arith.constant 0 : i32
    %c0_i32_0 = arith.constant 0 : i32
    %c0_i32_1 = arith.constant 0 : i32
    return %arg0, %c0_i32, %c0_i32_0 : i32, i32, i32
  }
  func.func @transform_5(%arg0: i32) -> (i32, i32, i32) {
    %c0_i32 = arith.constant 0 : i32
    %c0_i32_0 = arith.constant 0 : i32
    %c0_i32_1 = arith.constant 0 : i32
    return %arg0, %c0_i32, %c0_i32_0 : i32, i32, i32
  }
  func.func @transform_6(%arg0: i32) -> (i32, i32, i32) {
    %c0_i32 = arith.constant 0 : i32
    %c0_i32_0 = arith.constant 0 : i32
    %c0_i32_1 = arith.constant 0 : i32
    return %arg0, %c0_i32, %c0_i32_0 : i32, i32, i32
  }
}

module attributes {stable_mosaic.version = 11 : i64} {
  func.func @conv3x3_kernel(%arg0: i32, %arg1: memref<1x16x128xf32, #tpu.memory_space<vmem>>, %arg2: memref<3x128x128xf32, #tpu.memory_space<vmem>>, %arg3: memref<1x128xf32, #tpu.memory_space<vmem>>, %arg4: memref<1x128xf32, #tpu.memory_space<vmem>>, %arg5: memref<1x16x128xf32, #tpu.memory_space<vmem>>, %arg6: memref<1x1x128xf32, #tpu.memory_space<vmem>>, %arg7: memref<1x1x128xf32, #tpu.memory_space<vmem>>, %arg8: memref<24x128xf32, #tpu.memory_space<vmem>>) attributes {dimension_semantics = [#tpu.dimension_semantics<parallel>], iteration_bounds = array<i64: 2>, scalar_prefetch = 0 : i64, scratch_operands = 1 : i64, tpu.core_type = #tpu.core_type<tc>, window_params = [{transform_indices = @transform_0, window_bounds = array<i64: 1, 16, 128>}, {pipeline_mode = #tpu.pipeline_mode<synchronous>, transform_indices = @transform_1, window_bounds = array<i64: 3, 128, 128>}, {pipeline_mode = #tpu.pipeline_mode<synchronous>, transform_indices = @transform_2, window_bounds = array<i64: 1, 128>}, {pipeline_mode = #tpu.pipeline_mode<synchronous>, transform_indices = @transform_3, window_bounds = array<i64: 1, 128>}, {transform_indices = @transform_4, window_bounds = array<i64: 1, 16, 128>}, {transform_indices = @transform_5, window_bounds = array<i64: 1, 1, 128>}, {transform_indices = @transform_6, window_bounds = array<i64: 1, 1, 128>}]} {
    %c0 = arith.constant 0 : index
    %c0_0 = arith.constant 0 : index
    %c0_1 = arith.constant 0 : index
    %0 = vector.load %arg1[%c0, %c0_0, %c0_1] : memref<1x16x128xf32, #tpu.memory_space<vmem>>, vector<1x16x128xf32>
    %1 = vector.shape_cast %0 : vector<1x16x128xf32> to vector<16x128xf32>
    %c0_2 = arith.constant 0 : index
    %c0_3 = arith.constant 0 : index
    %2 = vector.load %arg3[%c0_2, %c0_3] : memref<1x128xf32, #tpu.memory_space<vmem>>, vector<1x128xf32>
    %3 = vector.broadcast %2 : vector<1x128xf32> to vector<16x128xf32>
    %4 = arith.mulf %1, %3 : vector<16x128xf32>
    %c0_4 = arith.constant 0 : index
    %c0_5 = arith.constant 0 : index
    %5 = vector.load %arg4[%c0_4, %c0_5] : memref<1x128xf32, #tpu.memory_space<vmem>>, vector<1x128xf32>
    %6 = vector.broadcast %5 : vector<1x128xf32> to vector<16x128xf32>
    %7 = arith.addf %4, %6 : vector<16x128xf32>
    %cst = arith.constant 0.000000e+00 : f32
    %8 = vector.broadcast %cst : f32 to vector<16x128xf32>
    %9 = arith.maximumf %7, %8 : vector<16x128xf32>
    %cst_6 = arith.constant 0.000000e+00 : f32
    %10 = vector.broadcast %cst_6 : f32 to vector<1x128xf32>
    %c0_7 = arith.constant 0 : index
    %c0_8 = arith.constant 0 : index
    %11 = vector.load %arg8[%c0_7, %c0_8] : memref<24x128xf32, #tpu.memory_space<vmem>>, vector<1x128xf32>
    tpu.vector_store %arg8[%c0_7, %c0_8], %10 {strides = array<i32>} : memref<24x128xf32, #tpu.memory_space<vmem>>, vector<1x128xf32>,
    %cst_9 = arith.constant 0.000000e+00 : f32
    %12 = vector.broadcast %cst_9 : f32 to vector<1x128xf32>
    %c17 = arith.constant 17 : index
    %c0_10 = arith.constant 0 : index
    %13 = vector.load %arg8[%c17, %c0_10] : memref<24x128xf32, #tpu.memory_space<vmem>>, vector<1x128xf32>
    tpu.vector_store %arg8[%c17, %c0_10], %12 {strides = array<i32>} : memref<24x128xf32, #tpu.memory_space<vmem>>, vector<1x128xf32>,
    %c1 = arith.constant 1 : index
    %c0_11 = arith.constant 0 : index
    %14 = vector.load %arg8[%c1, %c0_11] : memref<24x128xf32, #tpu.memory_space<vmem>>, vector<16x128xf32>
    tpu.vector_store %arg8[%c1, %c0_11], %9 {strides = array<i32>} : memref<24x128xf32, #tpu.memory_space<vmem>>, vector<16x128xf32>,
    %c0_12 = arith.constant 0 : index
    %c0_13 = arith.constant 0 : index
    %15 = vector.load %arg8[%c0_12, %c0_13] : memref<24x128xf32, #tpu.memory_space<vmem>>, vector<16x128xf32>
    %c0_14 = arith.constant 0 : index
    %c0_15 = arith.constant 0 : index
    %c0_16 = arith.constant 0 : index
    %16 = vector.load %arg2[%c0_14, %c0_15, %c0_16] : memref<3x128x128xf32, #tpu.memory_space<vmem>>, vector<1x128x128xf32>
    %17 = vector.shape_cast %16 : vector<1x128x128xf32> to vector<128x128xf32>
    %cst_17 = arith.constant dense<0.000000e+00> : vector<16x128xf32>
    %18 = tpu.matmul %15, %17, %cst_17 {dimension_numbers = #tpu.dot_dimension_numbers<[1], [0], [0], [1], [0, 0, 1, 1], [], []>} : vector<16x128xf32>, vector<128x128xf32>, vector<16x128xf32> -> vector<16x128xf32>
    %c1_18 = arith.constant 1 : index
    %c0_19 = arith.constant 0 : index
    %19 = vector.load %arg8[%c1_18, %c0_19] : memref<24x128xf32, #tpu.memory_space<vmem>>, vector<16x128xf32>
    %c1_20 = arith.constant 1 : index
    %c0_21 = arith.constant 0 : index
    %c0_22 = arith.constant 0 : index
    %20 = vector.load %arg2[%c1_20, %c0_21, %c0_22] : memref<3x128x128xf32, #tpu.memory_space<vmem>>, vector<1x128x128xf32>
    %21 = vector.shape_cast %20 : vector<1x128x128xf32> to vector<128x128xf32>
    %cst_23 = arith.constant dense<0.000000e+00> : vector<16x128xf32>
    %22 = tpu.matmul %19, %21, %cst_23 {dimension_numbers = #tpu.dot_dimension_numbers<[1], [0], [0], [1], [0, 0, 1, 1], [], []>} : vector<16x128xf32>, vector<128x128xf32>, vector<16x128xf32> -> vector<16x128xf32>
    %23 = arith.addf %18, %22 : vector<16x128xf32>
    %c2 = arith.constant 2 : index
    %c0_24 = arith.constant 0 : index
    %24 = vector.load %arg8[%c2, %c0_24] : memref<24x128xf32, #tpu.memory_space<vmem>>, vector<16x128xf32>
    %c2_25 = arith.constant 2 : index
    %c0_26 = arith.constant 0 : index
    %c0_27 = arith.constant 0 : index
    %25 = vector.load %arg2[%c2_25, %c0_26, %c0_27] : memref<3x128x128xf32, #tpu.memory_space<vmem>>, vector<1x128x128xf32>
    %26 = vector.shape_cast %25 : vector<1x128x128xf32> to vector<128x128xf32>
    %cst_28 = arith.constant dense<0.000000e+00> : vector<16x128xf32>
    %27 = tpu.matmul %24, %26, %cst_28 {dimension_numbers = #tpu.dot_dimension_numbers<[1], [0], [0], [1], [0, 0, 1, 1], [], []>} : vector<16x128xf32>, vector<128x128xf32>, vector<16x128xf32> -> vector<16x128xf32>
    %28 = arith.addf %23, %27 : vector<16x128xf32>
    %c0_29 = arith.constant 0 : index
    %c0_30 = arith.constant 0 : index
    %c0_31 = arith.constant 0 : index
    %29 = vector.load %arg5[%c0_29, %c0_30, %c0_31] : memref<1x16x128xf32, #tpu.memory_space<vmem>>, vector<1x16x128xf32>
    %30 = vector.shape_cast %29 : vector<1x16x128xf32> to vector<16x128xf32>
    %31 = vector.shape_cast %28 : vector<16x128xf32> to vector<1x16x128xf32>
    tpu.vector_store %arg5[%c0_29, %c0_30, %c0_31], %31 {strides = array<i32>} : memref<1x16x128xf32, #tpu.memory_space<vmem>>, vector<1x16x128xf32>,
    %cst_32 = arith.constant dense<0.000000e+00> : vector<128xf32>
    %32 = vector.multi_reduction <add>, %28, %cst_32 [0] : vector<16x128xf32> to vector<128xf32>
    %33 = vector.shape_cast %32 : vector<128xf32> to vector<1x128xf32>
    %c0_33 = arith.constant 0 : index
    %c0_34 = arith.constant 0 : index
    %c0_35 = arith.constant 0 : index
    %34 = vector.load %arg6[%c0_33, %c0_34, %c0_35] : memref<1x1x128xf32, #tpu.memory_space<vmem>>, vector<1x1x128xf32>
    %35 = vector.shape_cast %34 : vector<1x1x128xf32> to vector<1x128xf32>
    %36 = vector.shape_cast %33 : vector<1x128xf32> to vector<1x1x128xf32>
    tpu.vector_store %arg6[%c0_33, %c0_34, %c0_35], %36 {strides = array<i32>} : memref<1x1x128xf32, #tpu.memory_space<vmem>>, vector<1x1x128xf32>,
    %37 = arith.mulf %28, %28 : vector<16x128xf32>
    %cst_36 = arith.constant dense<0.000000e+00> : vector<128xf32>
    %38 = vector.multi_reduction <add>, %37, %cst_36 [0] : vector<16x128xf32> to vector<128xf32>
    %39 = vector.shape_cast %38 : vector<128xf32> to vector<1x128xf32>
    %c0_37 = arith.constant 0 : index
    %c0_38 = arith.constant 0 : index
    %c0_39 = arith.constant 0 : index
    %40 = vector.load %arg7[%c0_37, %c0_38, %c0_39] : memref<1x1x128xf32, #tpu.memory_space<vmem>>, vector<1x1x128xf32>
    %41 = vector.shape_cast %40 : vector<1x1x128xf32> to vector<1x128xf32>
    %42 = vector.shape_cast %39 : vector<1x128xf32> to vector<1x1x128xf32>
    tpu.vector_store %arg7[%c0_37, %c0_38, %c0_39], %42 {strides = array<i32>} : memref<1x1x128xf32, #tpu.memory_space<vmem>>, vector<1x1x128xf32>,
    return
  }
  func.func @transform_0(%arg0: i32) -> (i32, i32, i32) {
    %c0_i32 = arith.constant 0 : i32
    %c0_i32_0 = arith.constant 0 : i32
    %c0_i32_1 = arith.constant 0 : i32
    return %arg0, %c0_i32, %c0_i32_0 : i32, i32, i32
  }
  func.func @transform_1(%arg0: i32) -> (i32, i32, i32) {
    %c0_i32 = arith.constant 0 : i32
    %c0_i32_0 = arith.constant 0 : i32
    %c0_i32_1 = arith.constant 0 : i32
    %c0_i32_2 = arith.constant 0 : i32
    return %c0_i32, %c0_i32_0, %c0_i32_1 : i32, i32, i32
  }
  func.func @transform_2(%arg0: i32) -> (i32, i32) {
    %c0_i32 = arith.constant 0 : i32
    %c0_i32_0 = arith.constant 0 : i32
    %c0_i32_1 = arith.constant 0 : i32
    return %c0_i32, %c0_i32_0 : i32, i32
  }
  func.func @transform_3(%arg0: i32) -> (i32, i32) {
    %c0_i32 = arith.constant 0 : i32
    %c0_i32_0 = arith.constant 0 : i32
    %c0_i32_1 = arith.constant 0 : i32
    return %c0_i32, %c0_i32_0 : i32, i32
  }
  func.func @transform_4(%arg0: i32) -> (i32, i32, i32) {
    %c0_i32 = arith.constant 0 : i32
    %c0_i32_0 = arith.constant 0 : i32
    %c0_i32_1 = arith.constant 0 : i32
    return %arg0, %c0_i32, %c0_i32_0 : i32, i32, i32
  }
  func.func @transform_5(%arg0: i32) -> (i32, i32, i32) {
    %c0_i32 = arith.constant 0 : i32
    %c0_i32_0 = arith.constant 0 : i32
    %c0_i32_1 = arith.constant 0 : i32
    return %arg0, %c0_i32, %c0_i32_0 : i32, i32, i32
  }
  func.func @transform_6(%arg0: i32) -> (i32, i32, i32) {
    %c0_i32 = arith.constant 0 : i32
    %c0_i32_0 = arith.constant 0 : i32
    %c0_i32_1 = arith.constant 0 : i32
    return %arg0, %c0_i32, %c0_i32_0 : i32, i32, i32
  }
}

module attributes {stable_mosaic.version = 11 : i64} {
  func.func @bn_relu_kernel(%arg0: i32, %arg1: memref<32x128xf32, #tpu.memory_space<vmem>>, %arg2: memref<1x128xf32, #tpu.memory_space<vmem>>, %arg3: memref<1x128xf32, #tpu.memory_space<vmem>>, %arg4: memref<32x128xf32, #tpu.memory_space<vmem>>) attributes {dimension_semantics = [#tpu.dimension_semantics<parallel>], iteration_bounds = array<i64: 1>, scalar_prefetch = 0 : i64, scratch_operands = 0 : i64, tpu.core_type = #tpu.core_type<tc>, window_params = [{transform_indices = @transform_0, window_bounds = array<i64: 32, 128>}, {pipeline_mode = #tpu.pipeline_mode<synchronous>, transform_indices = @transform_1, window_bounds = array<i64: 1, 128>}, {pipeline_mode = #tpu.pipeline_mode<synchronous>, transform_indices = @transform_2, window_bounds = array<i64: 1, 128>}, {transform_indices = @transform_3, window_bounds = array<i64: 32, 128>}]} {
    %c0 = arith.constant 0 : index
    %c0_0 = arith.constant 0 : index
    %0 = vector.load %arg1[%c0, %c0_0] : memref<32x128xf32, #tpu.memory_space<vmem>>, vector<32x128xf32>
    %c0_1 = arith.constant 0 : index
    %c0_2 = arith.constant 0 : index
    %1 = vector.load %arg2[%c0_1, %c0_2] : memref<1x128xf32, #tpu.memory_space<vmem>>, vector<1x128xf32>
    %2 = vector.broadcast %1 : vector<1x128xf32> to vector<32x128xf32>
    %3 = arith.mulf %0, %2 : vector<32x128xf32>
    %c0_3 = arith.constant 0 : index
    %c0_4 = arith.constant 0 : index
    %4 = vector.load %arg3[%c0_3, %c0_4] : memref<1x128xf32, #tpu.memory_space<vmem>>, vector<1x128xf32>
    %5 = vector.broadcast %4 : vector<1x128xf32> to vector<32x128xf32>
    %6 = arith.addf %3, %5 : vector<32x128xf32>
    %cst = arith.constant 0.000000e+00 : f32
    %7 = vector.broadcast %cst : f32 to vector<32x128xf32>
    %8 = arith.maximumf %6, %7 : vector<32x128xf32>
    %c0_5 = arith.constant 0 : index
    %c0_6 = arith.constant 0 : index
    %9 = vector.load %arg4[%c0_5, %c0_6] : memref<32x128xf32, #tpu.memory_space<vmem>>, vector<32x128xf32>
    tpu.vector_store %arg4[%c0_5, %c0_6], %8 {strides = array<i32>} : memref<32x128xf32, #tpu.memory_space<vmem>>, vector<32x128xf32>,
    return
  }
  func.func @transform_0(%arg0: i32) -> (i32, i32) {
    %c0_i32 = arith.constant 0 : i32
    %c0_i32_0 = arith.constant 0 : i32
    return %arg0, %c0_i32 : i32, i32
  }
  func.func @transform_1(%arg0: i32) -> (i32, i32) {
    %c0_i32 = arith.constant 0 : i32
    %c0_i32_0 = arith.constant 0 : i32
    %c0_i32_1 = arith.constant 0 : i32
    return %c0_i32, %c0_i32_0 : i32, i32
  }
  func.func @transform_2(%arg0: i32) -> (i32, i32) {
    %c0_i32 = arith.constant 0 : i32
    %c0_i32_0 = arith.constant 0 : i32
    %c0_i32_1 = arith.constant 0 : i32
    return %c0_i32, %c0_i32_0 : i32, i32
  }
  func.func @transform_3(%arg0: i32) -> (i32, i32) {
    %c0_i32 = arith.constant 0 : i32
    %c0_i32_0 = arith.constant 0 : i32
    return %arg0, %c0_i32 : i32, i32
  }
}

</mosaic_0001>

<llo_original>
// kernel: tile.28
$region0: #{tile.28}
  #allocation0 [shape = 's32[1]{0}', space=sflag, size = 0x4, scoped, tag = 'scoped memory for tile.28']
  %s0 = inlined_call_operand.vmem [shape: f32[8], index: 0, kind: input, shape index: {}]
  %s1 = inlined_call_operand.vmem [shape: f32[16,8], index: 1, kind: output, shape index: {}]
  // Predicated region
  $region2: #{tile.28} parent=0 // pred_check
    _
  $region3: #{tile.28} parent=0 // pred_check_branch
    %3 = sbr.rel (0) target = $region5
  $region4: #{tile.28} parent=0 // pred_region
    _
  $region5: #{tile.28} parent=0 // pred_fallthru
    _
  %v4 = vld [vmem:[%s0] ss:$0 sm:$0xff]
  %5 = vst [vmem:[%s1] sm:$0xff] %v4
  %s6 = scalar_lea.vmem %s1, 8
  %7 = vst [vmem:[%s6] sm:$0xff] %v4

// kernel: tile.29
$region0: #{tile.29}
  %s0 = inlined_call_operand.vmem [shape: f32[16,8], index: 0, kind: input, shape index: {}]
  %s1 = inlined_call_operand.vmem [shape: f32[1,128], index: 1, kind: output, shape index: {}]
  $region1: #{tile.29} parent=0
    #allocation0 [shape = 'u8[4096]{0}', space=vmem, size = 0x1000, scoped, tag = 'scoped mem for output reshape']
    %v2 = vld [vmem:[%s0] sm:$0x1]
    %vm3 = vcmask 64512
    %4 = vst.msk [vmem:[#allocation0] sm:$0x1] %vm3, %v2
    %s5 = scalar_lea.vmem %s0, 15
    %v6 = vld [vmem:[%s5] sm:$0x1]
    %7 = vrot.lane.b32.xlu0 %v6, 120
    %v8 = vpop.permute.xlu0 %7
    %vm9 = vcmask 1048512
    %10 = vst.msk [vmem:[#allocation0] sm:$0x1] %vm9, %v8
    %s11 = scalar_lea.vmem %s0, 14
    %v12 = vld [vmem:[%s11] sm:$0x1]
    %13 = vrot.lane.b32.xlu0 %v12, 112
    %v14 = vpop.permute.xlu0 %13
    %vm15 = vcmask 982912
    %16 = vst.msk [vmem:[#allocation0] sm:$0x1] %vm15, %v14
    %s17 = scalar_lea.vmem %s0, 13
    %v18 = vld [vmem:[%s17] sm:$0x1]
    %19 = vrot.lane.b32.xlu0 %v18, 104
    %v20 = vpop.permute.xlu0 %19
    %vm21 = vcmask 917312
    %22 = vst.msk [vmem:[#allocation0] sm:$0x1] %vm21, %v20
    %s23 = scalar_lea.vmem %s0, 12
    %v24 = vld [vmem:[%s23] sm:$0x1]
    %25 = vrot.lane.b32.xlu0 %v24, 96
    %v26 = vpop.permute.xlu0 %25
    %vm27 = vcmask 851712
    %28 = vst.msk [vmem:[#allocation0] sm:$0x1] %vm27, %v26
    %s29 = scalar_lea.vmem %s0, 11
    %v30 = vld [vmem:[%s29] sm:$0x1]
    %31 = vrot.lane.b32.xlu0 %v30, 88
    %v32 = vpop.permute.xlu0 %31
    %vm33 = vcmask 786112
    %34 = vst.msk [vmem:[#allocation0] sm:$0x1] %vm33, %v32
    %s35 = scalar_lea.vmem %s0, 10
    %v36 = vld [vmem:[%s35] sm:$0x1]
    %37 = vrot.lane.b32.xlu0 %v36, 80
    %v38 = vpop.permute.xlu0 %37
    %vm39 = vcmask 720512
    %40 = vst.msk [vmem:[#allocation0] sm:$0x1] %vm39, %v38
    %s41 = scalar_lea.vmem %s0, 9
    %v42 = vld [vmem:[%s41] sm:$0x1]
    %43 = vrot.lane.b32.xlu0 %v42, 72
    %v44 = vpop.permute.xlu0 %43
    %vm45 = vcmask 654912
    %46 = vst.msk [vmem:[#allocation0] sm:$0x1] %vm45, %v44
    %s47 = scalar_lea.vmem %s0, 8
    %v48 = vld [vmem:[%s47] sm:$0x1]
    %49 = vrot.lane.b32.xlu0 %v48, 64
    %v50 = vpop.permute.xlu0 %49
    %vm51 = vcmask 589312
    %52 = vst.msk [vmem:[#allocation0] sm:$0x1] %vm51, %v50
    %s53 = scalar_lea.vmem %s0, 7
    %v54 = vld [vmem:[%s53] sm:$0x1]
    %55 = vrot.lane.b32.xlu0 %v54, 56
    %v56 = vpop.permute.xlu0 %55
    %vm57 = vcmask 523712
    %58 = vst.msk [vmem:[#allocation0] sm:$0x1] %vm57, %v56
    %s59 = scalar_lea.vmem %s0, 6
    %v60 = vld [vmem:[%s59] sm:$0x1]
    %61 = vrot.lane.b32.xlu0 %v60, 48
    %v62 = vpop.permute.xlu0 %61
    %vm63 = vcmask 458112
    %64 = vst.msk [vmem:[#allocation0] sm:$0x1] %vm63, %v62
    %s65 = scalar_lea.vmem %s0, 5
    %v66 = vld [vmem:[%s65] sm:$0x1]
    %67 = vrot.lane.b32.xlu0 %v66, 40
    %v68 = vpop.permute.xlu0 %67
    %vm69 = vcmask 392512
    %70 = vst.msk [vmem:[#allocation0] sm:$0x1] %vm69, %v68
    %s71 = scalar_lea.vmem %s0, 4
    %v72 = vld [vmem:[%s71] sm:$0x1]
    %73 = vrot.lane.b32.xlu0 %v72, 32
    %v74 = vpop.permute.xlu0 %73
    %vm75 = vcmask 326912
    %76 = vst.msk [vmem:[#allocation0] sm:$0x1] %vm75, %v74
    %s77 = scalar_lea.vmem %s0, 3
    %v78 = vld [vmem:[%s77] sm:$0x1]
    %79 = vrot.lane.b32.xlu0 %v78, 24
    %v80 = vpop.permute.xlu0 %79
    %vm81 = vcmask 261312
    %82 = vst.msk [vmem:[#allocation0] sm:$0x1] %vm81, %v80
    %s83 = scalar_lea.vmem %s0, 2
    %v84 = vld [vmem:[%s83] sm:$0x1]
    %85 = vrot.lane.b32.xlu0 %v84, 16
    %v86 = vpop.permute.xlu0 %85
    %vm87 = vcmask 195712
    %88 = vst.msk [vmem:[#allocation0] sm:$0x1] %vm87, %v86
    %s89 = scalar_lea.vmem %s0, 1
    %v90 = vld [vmem:[%s89] sm:$0x1]
    %91 = vrot.lane.b32.xlu0 %v90, 8
    %v92 = vpop.permute.xlu0 %91
    %vm93 = vcmask 130112
    %94 = vst.msk [vmem:[#allocation0] sm:$0x1] %vm93, %v92
    %s96 = sshll.u32 1, 1
    %s97 = ssub.s32 %s96, 1
    %v99 = vld [vmem:[#allocation0] sm:%s97]
    %s100 = sshll.u32 1, 1
    %s101 = ssub.s32 %s100, 1
    %102 = vst [vmem:[%s1] sm:%s101] %v99

// kernel: double_conv_forward.3
$region0: #{double_conv_forward.3}
  #allocation0 [shape = 'u32[]', space=smem, size = 0x4, offset = 0x4, fixed_abs, tag = 'smem constant byte address 0x4 - core index']
  #allocation1 [shape = 'u32[144,128]{1,0:T(1,128)}', space=vmem, size = 0x12000, scoped, tag = 'internal scratch']
  #allocation2 [shape = 'f32[24,64]{1,0:T(8,128)}', space=vmem, size = 0x3000, scoped, tag = 'scratch operand']
  %s0 = inlined_call_operand.vmem [shape: f32[2,16,64], index: 0, kind: input, shape index: {}]
  %s1 = inlined_call_operand.vmem [shape: f32[3,64,128], index: 1, kind: input, shape index: {}]
  %s2 = inlined_call_operand.vmem [shape: f32[1,64], index: 2, kind: input, shape index: {}]
  %s3 = inlined_call_operand.vmem [shape: f32[1,64], index: 3, kind: input, shape index: {}]
  %s4 = inlined_call_operand.vmem [shape: f32[2,16,128], index: 4, kind: output, shape index: {0}]
  %s5 = inlined_call_operand.vmem [shape: f32[2,1,128], index: 5, kind: output, shape index: {1}]
  %s6 = inlined_call_operand.vmem [shape: f32[2,1,128], index: 6, kind: output, shape index: {2}]
  %7 = xla_tuple %s4, %s5, %s6
  %s8 = sld [smem:[#allocation0]]
  $region65: #{double_conv_forward.3} parent=0
    _
  %s10 = ssub.s32 1, %s8
  %s11 = scalar_select 0, %s10, %s8
  loop: start=0, step=1, limit=4
  $region2: #{double_conv_forward.3} parent=0 // loop_pre_header
    _
  $region3: #{double_conv_forward.3} parent=0 // loop_header
    %s13 = sphi 0, %s17
    %p14 = scmp.ge.s32.totalorder %s13, 4
    %s23 = sphi 0, %s25
    %s26 = sphi 0, %s23
    %s27 = sphi 0, %s26
    %s43 = sphi 0, %s27
    %s47 = sphi 0, %s47
    %s49 = sphi 0, %s47
    %s50 = sphi 0, %s49
    %s64 = sphi 0, %s50
    %s68 = sphi 0, %s68
    %s70 = sphi 0, %s68
    %s71 = sphi 0, %s70
    %s85 = sphi 0, %s71
    %s89 = sphi 0, %s89
    %s91 = sphi 0, %s89
    %s92 = sphi 0, %s91
    %s106 = sphi 0, %s92
    %s112 = sphi 0, %s114
    %s115 = sphi 0, %s112
    %s116 = sphi 0, %s115
    %s132 = sphi 0, %s116
    %s138 = sphi 0, %s140
    %s141 = sphi 0, %s138
    %s142 = sphi 0, %s141
    %s158 = sphi 0, %s142
    %s164 = sphi 0, %s166
    %s167 = sphi 0, %s164
    %s168 = sphi 0, %s167
    %s184 = sphi 0, %s168
  $region4: #{double_conv_forward.3} parent=0 // loop_header_branch
    %16 = sbr.rel (%p14) target = $region8
  $region5: #{double_conv_forward.3} parent=0 // loop_body
    %s18 = ssub.s32 %s13, 1
    %s19 = ssub.s32 %s13, 2
    %s20 = sadd.s32 %s13, 1
    %s21 = ssub.s32 %s13, %s20
    %p22 = scmp.eq.s32.totalorder %s21, 0
    %s24 = sadd.s32 %s23, 1
    %s25 = scalar_select %p22, %s23, %s24
    %p28 = pneg %p22
    %p29 = scmp.eq.s32.totalorder %s13, 1
    %p30 = por %p28, %p29
    %p31 = scmp.ne.s32.totalorder %s23, %s26
    %p32 = scmp.eq.s32.totalorder %s13, 0
    %p33 = por %p31, %p32
    %p34 = scmp.ne.s32.totalorder %s23, %s26
    %p35 = scmp.eq.s32.totalorder %s18, 1
    %p36 = por %p34, %p35
    %p37 = scmp.ne.s32.totalorder %s26, %s27
    %p38 = scmp.eq.s32.totalorder %s18, 0
    %p39 = por %p37, %p38
    %p40 = scmp.ne.s32.totalorder %s26, %s27
    %p41 = scmp.eq.s32.totalorder %s19, 1
    %p42 = por %p40, %p41
    %p44 = scmp.ne.s32.totalorder %s27, %s43
    %p45 = scmp.eq.s32.totalorder %s19, 0
    %p46 = por %p44, %p45
    %s48 = sadd.s32 %s47, 1
    %p51 = scmp.eq.s32.totalorder %s13, 1
    %p52 = scmp.ne.s32.totalorder %s47, %s49
    %p53 = scmp.eq.s32.totalorder %s13, 0
    %p54 = por %p52, %p53
    %p55 = scmp.ne.s32.totalorder %s47, %s49
    %p56 = scmp.eq.s32.totalorder %s18, 1
    %p57 = por %p55, %p56
    %p58 = scmp.ne.s32.totalorder %s49, %s50
    %p59 = scmp.eq.s32.totalorder %s18, 0
    %p60 = por %p58, %p59
    %p61 = scmp.ne.s32.totalorder %s49, %s50
    %p62 = scmp.eq.s32.totalorder %s19, 1
    %p63 = por %p61, %p62
    %p65 = scmp.ne.s32.totalorder %s50, %s64
    %p66 = scmp.eq.s32.totalorder %s19, 0
    %p67 = por %p65, %p66
    %s69 = sadd.s32 %s68, 1
    %p72 = scmp.eq.s32.totalorder %s13, 1
    %p73 = scmp.ne.s32.totalorder %s68, %s70
    %p74 = scmp.eq.s32.totalorder %s13, 0
    %p75 = por %p73, %p74
    %p76 = scmp.ne.s32.totalorder %s68, %s70
    %p77 = scmp.eq.s32.totalorder %s18, 1
    %p78 = por %p76, %p77
    %p79 = scmp.ne.s32.totalorder %s70, %s71
    %p80 = scmp.eq.s32.totalorder %s18, 0
    %p81 = por %p79, %p80
    %p82 = scmp.ne.s32.totalorder %s70, %s71
    %p83 = scmp.eq.s32.totalorder %s19, 1
    %p84 = por %p82, %p83
    %p86 = scmp.ne.s32.totalorder %s71, %s85
    %p87 = scmp.eq.s32.totalorder %s19, 0
    %p88 = por %p86, %p87
    %s90 = sadd.s32 %s89, 1
    %p93 = scmp.eq.s32.totalorder %s13, 1
    %p94 = scmp.ne.s32.totalorder %s89, %s91
    %p95 = scmp.eq.s32.totalorder %s13, 0
    %p96 = por %p94, %p95
    %p97 = scmp.ne.s32.totalorder %s89, %s91
    %p98 = scmp.eq.s32.totalorder %s18, 1
    %p99 = por %p97, %p98
    %p100 = scmp.ne.s32.totalorder %s91, %s92
    %p101 = scmp.eq.s32.totalorder %s18, 0
    %p102 = por %p100, %p101
    %p103 = scmp.ne.s32.totalorder %s91, %s92
    %p104 = scmp.eq.s32.totalorder %s19, 1
    %p105 = por %p103, %p104
    %p107 = scmp.ne.s32.totalorder %s92, %s106
    %p108 = scmp.eq.s32.totalorder %s19, 0
    %p109 = por %p107, %p108
    %s110 = ssub.s32 %s13, %s20
    %p111 = scmp.eq.s32.totalorder %s110, 0
    %s113 = sadd.s32 %s112, 1
    %s114 = scalar_select %p111, %s112, %s113
    %p117 = pneg %p111
    %p118 = scmp.eq.s32.totalorder %s13, 1
    %p119 = por %p117, %p118
    %p120 = scmp.ne.s32.totalorder %s112, %s115
    %p121 = scmp.eq.s32.totalorder %s13, 0
    %p122 = por %p120, %p121
    %p123 = scmp.ne.s32.totalorder %s112, %s115
    %p124 = scmp.eq.s32.totalorder %s18, 1
    %p125 = por %p123, %p124
    %p126 = scmp.ne.s32.totalorder %s115, %s116
    %p127 = scmp.eq.s32.totalorder %s18, 0
    %p128 = por %p126, %p127
    %p129 = scmp.ne.s32.totalorder %s115, %s116
    %p130 = scmp.eq.s32.totalorder %s19, 1
    %p131 = por %p129, %p130
    %p133 = scmp.ne.s32.totalorder %s116, %s132
    %p134 = scmp.eq.s32.totalorder %s19, 0
    %p135 = por %p133, %p134
    %s136 = ssub.s32 %s13, %s20
    %p137 = scmp.eq.s32.totalorder %s136, 0
    %s139 = sadd.s32 %s138, 1
    %s140 = scalar_select %p137, %s138, %s139
    %p143 = pneg %p137
    %p144 = scmp.eq.s32.totalorder %s13, 1
    %p145 = por %p143, %p144
    %p146 = scmp.ne.s32.totalorder %s138, %s141
    %p147 = scmp.eq.s32.totalorder %s13, 0
    %p148 = por %p146, %p147
    %p149 = scmp.ne.s32.totalorder %s138, %s141
    %p150 = scmp.eq.s32.totalorder %s18, 1
    %p151 = por %p149, %p150
    %p152 = scmp.ne.s32.totalorder %s141, %s142
    %p153 = scmp.eq.s32.totalorder %s18, 0
    %p154 = por %p152, %p153
    %p155 = scmp.ne.s32.totalorder %s141, %s142
    %p156 = scmp.eq.s32.totalorder %s19, 1
    %p157 = por %p155, %p156
    %p159 = scmp.ne.s32.totalorder %s142, %s158
    %p160 = scmp.eq.s32.totalorder %s19, 0
    %p161 = por %p159, %p160
    %s162 = ssub.s32 %s13, %s20
    %p163 = scmp.eq.s32.totalorder %s162, 0
    %s165 = sadd.s32 %s164, 1
    %s166 = scalar_select %p163, %s164, %s165
    %p169 = pneg %p163
    %p170 = scmp.eq.s32.totalorder %s13, 1
    %p171 = por %p169, %p170
    %p172 = scmp.ne.s32.totalorder %s164, %s167
    %p173 = scmp.eq.s32.totalorder %s13, 0
    %p174 = por %p172, %p173
    %p175 = scmp.ne.s32.totalorder %s164, %s167
    %p176 = scmp.eq.s32.totalorder %s18, 1
    %p177 = por %p175, %p176
    %p178 = scmp.ne.s32.totalorder %s167, %s168
    %p179 = scmp.eq.s32.totalorder %s18, 0
    %p180 = por %p178, %p179
    %p181 = scmp.ne.s32.totalorder %s167, %s168
    %p182 = scmp.eq.s32.totalorder %s19, 1
    %p183 = por %p181, %p182
    %p185 = scmp.ne.s32.totalorder %s168, %s184
    %p186 = scmp.eq.s32.totalorder %s19, 0
    %p187 = por %p185, %p186
    %p188 = scmp.le.s32.totalorder 1, %s13
    %p189 = scmp.lt.s32.totalorder %s13, 3
    %p190 = pnand %p188, %p189
    %p191 = pneg %p190
    // Predicated region
    $region9: #{double_conv_forward.3} parent=5 // pred_check
      _
    $region10: #{double_conv_forward.3} parent=5 // pred_check_branch
      %193 = sbr.rel (%p190) target = $region12
    $region11: #{double_conv_forward.3} parent=5 // pred_region
      %s194 = ssub.s32 %s13, 1
      // Predicated region
      $region13: #{double_conv_forward.3} parent=11 // pred_check
        %p195 = pneg %p60
      $region14: #{double_conv_forward.3} parent=11 // pred_check_branch
        %197 = sbr.rel (%p195) target = $region16
      $region15: #{double_conv_forward.3} parent=11 // pred_region
        _
      $region16: #{double_conv_forward.3} parent=11 // pred_fallthru
        _
      // Predicated region
      $region17: #{double_conv_forward.3} parent=11 // pred_check
        %p198 = pneg %p81
      $region18: #{double_conv_forward.3} parent=11 // pred_check_branch
        %200 = sbr.rel (%p198) target = $region20
      $region19: #{double_conv_forward.3} parent=11 // pred_region
        _
      $region20: #{double_conv_forward.3} parent=11 // pred_fallthru
        _
      // Predicated region
      $region21: #{double_conv_forward.3} parent=11 // pred_check
        %p201 = pneg %p102
      $region22: #{double_conv_forward.3} parent=11 // pred_check_branch
        %203 = sbr.rel (%p201) target = $region24
      $region23: #{double_conv_forward.3} parent=11 // pred_region
        _
      $region24: #{double_conv_forward.3} parent=11 // pred_fallthru
        _
    $region12: #{double_conv_forward.3} parent=5 // pred_fallthru
      _
    %p204 = scmp.lt.s32.totalorder %s13, 2
    // Predicated region
    $region25: #{double_conv_forward.3} parent=5 // pred_check
      %p205 = pneg %p204
    $region26: #{double_conv_forward.3} parent=5 // pred_check_branch
      %207 = sbr.rel (%p205) target = $region28
    $region27: #{double_conv_forward.3} parent=5 // pred_region
      // Predicated region
      $region29: #{double_conv_forward.3} parent=27 // pred_check
        %p208 = pneg %p33
      $region30: #{double_conv_forward.3} parent=27 // pred_check_branch
        %210 = sbr.rel (%p208) target = $region32
      $region31: #{double_conv_forward.3} parent=27 // pred_region
        %p211 = scmp.lt.s32.totalorder %s13, 1
        %s212 = scalar_select %p211, %s13, 1
        %s213 = smul.addr %s212, 2
        %s214 = smul.addr %s213, 8
        %s215 = scalar_lea.vmem %s0, %s214
      $region32: #{double_conv_forward.3} parent=27 // pred_fallthru
        _
    $region28: #{double_conv_forward.3} parent=5 // pred_fallthru
      _
    %p216 = scmp.le.s32.totalorder 1, %s13
    %p217 = scmp.lt.s32.totalorder %s13, 3
    %p218 = pnand %p216, %p217
    %p219 = pneg %p218
    // Predicated region
    $region33: #{double_conv_forward.3} parent=5 // pred_check
      _
    $region34: #{double_conv_forward.3} parent=5 // pred_check_branch
      %221 = sbr.rel (%p218) target = $region36
    $region35: #{double_conv_forward.3} parent=5 // pred_region
      %s222 = ssub.s32 %s13, 1
      %p223 = scmp.lt.s32.totalorder %s18, 1
      %s224 = scalar_select %p223, %s18, 1
      %s225 = smul.addr %s224, 2
      %s226 = smul.addr %s225, 8
      %s227 = scalar_lea.vmem %s0, %s226
      %p228 = pneg %p39
      %p229 = pneg %p36
      %p230 = pneg %p60
      %p231 = pneg %p57
      %p232 = pneg %p81
      %p233 = pneg %p78
      %p234 = pneg %p102
      %p235 = pneg %p99
      %p236 = pneg %p128
      %p237 = pneg %p125
      %p238 = scmp.lt.s32.totalorder %s18, 1
      %s239 = scalar_select %p238, %s18, 1
      %s240 = smul.addr %s239, 2
      %s241 = smul.addr %s240, 8
      %s242 = scalar_lea.vmem %s4, %s241
      %p243 = pneg %p154
      %p244 = pneg %p151
      %p245 = scmp.lt.s32.totalorder %s18, 1
      %s246 = scalar_select %p245, %s18, 1
      %s247 = scalar_lea.vmem %s5, %s246
      %p248 = pneg %p180
      %p249 = pneg %p177
      %p250 = scmp.lt.s32.totalorder %s18, 1
      %s251 = scalar_select %p250, %s18, 1
      %s252 = scalar_lea.vmem %s6, %s251
      %p253 = scmp.lt.s32.totalorder %s18, 1
      %s254 = scalar_select %p253, %s18, 1
      %s255 = smul.addr %s254, 2
      %s256 = smul.addr %s255, 8
      %s257 = scalar_lea.vmem %s0, %s256
      %p258 = scmp.lt.s32.totalorder %s18, 1
      %s259 = scalar_select %p258, %s18, 1
      %s260 = smul.addr %s259, 2
      %s261 = smul.addr %s260, 8
      %s262 = scalar_lea.vmem %s4, %s261
      %p263 = scmp.lt.s32.totalorder %s18, 1
      %s264 = scalar_select %p263, %s18, 1
      %s265 = scalar_lea.vmem %s5, %s264
      %p266 = scmp.lt.s32.totalorder %s18, 1
      %s267 = scalar_select %p266, %s18, 1
      %s268 = scalar_lea.vmem %s6, %s267
      %v269 = vld [vmem:[%s257] sm:$0xff]
      %v270 = vld [vmem:[%s257 + $0x8] sm:$0xff]
      %vm271 = vcmask 516096
      %272 = vst.msk [vmem:[#allocation2] sm:$0x1] %vm271, 0.0
      %273 = vst.msk [vmem:[#allocation2 + $0x11] sm:$0x1] %vm271, 0.0
      %vm274 = vcmask 523264
      %275 = vst.msk [vmem:[#allocation2 + $0x1] sm:$0xff] %vm274, %v269
      %276 = vst.msk [vmem:[#allocation2 + $0x9] sm:$0xff] %vm274, %v270
      %v277 = vld [vmem:[#allocation2] sm:$0xff]
      %v278 = vld [vmem:[#allocation2 + $0x8] sm:$0xff]
      %v279 = vld [vmem:[%s1] sm:$0xff]
      %v280 = vld [vmem:[%s1 + $0x8] sm:$0xff]
      %v281 = vld [vmem:[%s1 + $0x10] sm:$0xff]
      %v282 = vld [vmem:[%s1 + $0x18] sm:$0xff]
      %v283 = vld [vmem:[%s1 + $0x20] sm:$0xff]
      %v284 = vld [vmem:[%s1 + $0x28] sm:$0xff]
      %v285 = vld [vmem:[%s1 + $0x30] sm:$0xff]
      %v286 = vld [vmem:[%s1 + $0x38] sm:$0xff]
      %v287 = vld [vmem:[#allocation2 + $0x1] sm:$0xff]
      %v288 = vld [vmem:[#allocation2 + $0x9] sm:$0xff]
      %s289 = scalar_lea.vmem %s1, 64
      %v290 = vld [vmem:[%s289] sm:$0xff]
      %v291 = vld [vmem:[%s289 + $0x8] sm:$0xff]
      %v292 = vld [vmem:[%s289 + $0x10] sm:$0xff]
      %v293 = vld [vmem:[%s289 + $0x18] sm:$0xff]
      %v294 = vld [vmem:[%s289 + $0x20] sm:$0xff]
      %v295 = vld [vmem:[%s289 + $0x28] sm:$0xff]
      %v296 = vld [vmem:[%s289 + $0x30] sm:$0xff]
      %v297 = vld [vmem:[%s289 + $0x38] sm:$0xff]
      %v299 = vsel %vm274, %v287, 0
      %v302 = vsel %vm274, %v288, 0
      %304 = vmatprep.subr.mxu0 0.0
      %305 = vmatpush1.msra.mxu0 0.0
      %306 = vmatprep.subr.mxu0 0.0
      %307 = vmatpush1.msra.mxu0 0.0
      %308 = vmatprep.subr.mxu0 0.0
      %309 = vmatpush1.msra.mxu0 0.0
      %310 = vmatprep.subr.mxu0 0.0
      %311 = vmatpush1.msra.mxu0 0.0
      %312 = vmatprep.subr.mxu0 0.0
      %313 = vmatpush1.msra.mxu0 0.0
      %314 = vmatprep.subr.mxu0 0.0
      %315 = vmatpush1.msra.mxu0 0.0
      %316 = vmatprep.subr.mxu0 0.0
      %317 = vmatpush1.msra.mxu0 0.0
      %318 = vmatprep.subr.mxu0 0.0
      %319 = vmatpush1.msra.mxu0 0.0
      %320 = vmatprep.subr.mxu0 0.0
      %321 = vmatpush1.msra.mxu0 %v297
      %322 = vmatprep.subr.mxu0 0.0
      %323 = vmatpush1.msra.mxu0 %v296
      %324 = vmatprep.subr.mxu0 0.0
      %325 = vmatpush1.msra.mxu0 %v295
      %326 = vmatprep.subr.mxu0 0.0
      %327 = vmatpush1.msra.mxu0 %v294
      %328 = vmatprep.subr.mxu0 0.0
      %329 = vmatpush1.msra.mxu0 %v293
      %330 = vmatprep.subr.mxu0 0.0
      %331 = vmatpush1.msra.mxu0 %v292
      %332 = vmatprep.subr.mxu0 0.0
      %333 = vmatpush1.msra.mxu0 %v291
      %334 = vmatprep.subr.mxu0 0.0
      %335 = vmatpush1.msra.mxu0 %v290
      %336 = vmatprep.subr.mxu0 0.0
      %337 = vmatpush2.msra.mxu0 0.0
      %338 = vmatprep.subr.mxu0 0.0
      %339 = vmatpush2.msra.mxu0 0.0
      %340 = vmatprep.subr.mxu0 0.0
      %341 = vmatpush2.msra.mxu0 0.0
      %342 = vmatprep.subr.mxu0 0.0
      %343 = vmatpush2.msra.mxu0 0.0
      %344 = vmatprep.subr.mxu0 0.0
      %345 = vmatpush2.msra.mxu0 0.0
      %346 = vmatprep.subr.mxu0 0.0
      %347 = vmatpush2.msra.mxu0 0.0
      %348 = vmatprep.subr.mxu0 0.0
      %349 = vmatpush2.msra.mxu0 0.0
      %350 = vmatprep.subr.mxu0 0.0
      %351 = vmatpush2.msra.mxu0 0.0
      %352 = vmatprep.subr.mxu0 0.0
      %353 = vmatpush2.msra.mxu0 0.0
      %354 = vmatprep.subr.mxu0 0.0
      %355 = vmatpush2.msra.mxu0 0.0
      %356 = vmatprep.subr.mxu0 0.0
      %357 = vmatpush2.msra.mxu0 0.0
      %358 = vmatprep.subr.mxu0 0.0
      %359 = vmatpush2.msra.mxu0 0.0
      %360 = vmatprep.subr.mxu0 0.0
      %361 = vmatpush2.msra.mxu0 0.0
      %362 = vmatprep.subr.mxu0 0.0
      %363 = vmatpush2.msra.mxu0 0.0
      %364 = vmatprep.subr.mxu0 0.0
      %365 = vmatpush2.msra.mxu0 0.0
      %366 = vmatprep.subr.mxu0 0.0
      %367 = vmatpush2.msra.mxu0 0.0
      %368 = vmatprep.mubr.f32.mxu0 0.0
      %369 = vmatmul.mubr.f32.gmra.mxu0 %v299
      %v370 = vpop.f32.mrf.mxu0
      %v371 = vadd.f32 0.0, %v370
      %v372 = vpop.f32.mrf.mxu0
      %373 = vmatprep.mubr.f32.mxu0 0.0
      %374 = vmatmul.mubr.f32.gmra.mxu0 %v302
      %v375 = vpop.f32.mrf.mxu0
      %v376 = vadd.f32 0.0, %v375
      %v377 = vpop.f32.mrf.mxu0
      %378 = vdwg.mxu0
      %v380 = vsel %vm274, %v277, 0
      %v383 = vsel %vm274, %v278, 0
      %385 = vmatprep.subr.mxu0 0.0
      %386 = vmatpush1.msra.mxu0 0.0
      %387 = vmatprep.subr.mxu0 0.0
      %388 = vmatpush1.msra.mxu0 0.0
      %389 = vmatprep.subr.mxu0 0.0
      %390 = vmatpush1.msra.mxu0 0.0
      %391 = vmatprep.subr.mxu0 0.0
      %392 = vmatpush1.msra.mxu0 0.0
      %393 = vmatprep.subr.mxu0 0.0
      %394 = vmatpush1.msra.mxu0 0.0
      %395 = vmatprep.subr.mxu0 0.0
      %396 = vmatpush1.msra.mxu0 0.0
      %397 = vmatprep.subr.mxu0 0.0
      %398 = vmatpush1.msra.mxu0 0.0
      %399 = vmatprep.subr.mxu0 0.0
      %400 = vmatpush1.msra.mxu0 0.0
      %401 = vmatprep.subr.mxu0 0.0
      %402 = vmatpush1.msra.mxu0 %v286
      %403 = vmatprep.subr.mxu0 0.0
      %404 = vmatpush1.msra.mxu0 %v285
      %405 = vmatprep.subr.mxu0 0.0
      %406 = vmatpush1.msra.mxu0 %v284
      %407 = vmatprep.subr.mxu0 0.0
      %408 = vmatpush1.msra.mxu0 %v283
      %409 = vmatprep.subr.mxu0 0.0
      %410 = vmatpush1.msra.mxu0 %v282
      %411 = vmatprep.subr.mxu0 0.0
      %412 = vmatpush1.msra.mxu0 %v281
      %413 = vmatprep.subr.mxu0 0.0
      %414 = vmatpush1.msra.mxu0 %v280
      %415 = vmatprep.subr.mxu0 0.0
      %416 = vmatpush1.msra.mxu0 %v279
      %417 = vmatprep.subr.mxu0 0.0
      %418 = vmatpush2.msra.mxu0 0.0
      %419 = vmatprep.subr.mxu0 0.0
      %420 = vmatpush2.msra.mxu0 0.0
      %421 = vmatprep.subr.mxu0 0.0
      %422 = vmatpush2.msra.mxu0 0.0
      %423 = vmatprep.subr.mxu0 0.0
      %424 = vmatpush2.msra.mxu0 0.0
      %425 = vmatprep.subr.mxu0 0.0
      %426 = vmatpush2.msra.mxu0 0.0
      %427 = vmatprep.subr.mxu0 0.0
      %428 = vmatpush2.msra.mxu0 0.0
      %429 = vmatprep.subr.mxu0 0.0
      %430 = vmatpush2.msra.mxu0 0.0
      %431 = vmatprep.subr.mxu0 0.0
      %432 = vmatpush2.msra.mxu0 0.0
      %433 = vmatprep.subr.mxu0 0.0
      %434 = vmatpush2.msra.mxu0 0.0
      %435 = vmatprep.subr.mxu0 0.0
      %436 = vmatpush2.msra.mxu0 0.0
      %437 = vmatprep.subr.mxu0 0.0
      %438 = vmatpush2.msra.mxu0 0.0
      %439 = vmatprep.subr.mxu0 0.0
      %440 = vmatpush2.msra.mxu0 0.0
      %441 = vmatprep.subr.mxu0 0.0
      %442 = vmatpush2.msra.mxu0 0.0
      %443 = vmatprep.subr.mxu0 0.0
      %444 = vmatpush2.msra.mxu0 0.0
      %445 = vmatprep.subr.mxu0 0.0
      %446 = vmatpush2.msra.mxu0 0.0
      %447 = vmatprep.subr.mxu0 0.0
      %448 = vmatpush2.msra.mxu0 0.0
      %449 = vmatprep.mubr.f32.mxu0 0.0
      %450 = vmatmul.mubr.f32.gmra.mxu0 %v380
      %v451 = vpop.f32.mrf.mxu0
      %v452 = vadd.f32 %v371, %v451
      %v453 = vpop.f32.mrf.mxu0
      %454 = vmatprep.mubr.f32.mxu0 0.0
      %455 = vmatmul.mubr.f32.gmra.mxu0 %v383
      %v456 = vpop.f32.mrf.mxu0
      %v457 = vadd.f32 %v376, %v456
      %v458 = vpop.f32.mrf.mxu0
      %459 = vdwg.mxu0
      %v460 = vld [vmem:[#allocation2 + $0x2] sm:$0xff]
      %v461 = vld [vmem:[#allocation2 + $0xa] sm:$0xff]
      %s462 = scalar_lea.vmem %s1, 128
      %v463 = vld [vmem:[%s462] sm:$0xff]
      %v464 = vld [vmem:[%s462 + $0x8] sm:$0xff]
      %v465 = vld [vmem:[%s462 + $0x10] sm:$0xff]
      %v466 = vld [vmem:[%s462 + $0x18] sm:$0xff]
      %v467 = vld [vmem:[%s462 + $0x20] sm:$0xff]
      %v468 = vld [vmem:[%s462 + $0x28] sm:$0xff]
      %v469 = vld [vmem:[%s462 + $0x30] sm:$0xff]
      %v470 = vld [vmem:[%s462 + $0x38] sm:$0xff]
      %v472 = vsel %vm274, %v460, 0
      %v475 = vsel %vm274, %v461, 0
      %477 = vmatprep.subr.mxu0 0.0
      %478 = vmatpush1.msra.mxu0 0.0
      %479 = vmatprep.subr.mxu0 0.0
      %480 = vmatpush1.msra.mxu0 0.0
      %481 = vmatprep.subr.mxu0 0.0
      %482 = vmatpush1.msra.mxu0 0.0
      %483 = vmatprep.subr.mxu0 0.0
      %484 = vmatpush1.msra.mxu0 0.0
      %485 = vmatprep.subr.mxu0 0.0
      %486 = vmatpush1.msra.mxu0 0.0
      %487 = vmatprep.subr.mxu0 0.0
      %488 = vmatpush1.msra.mxu0 0.0
      %489 = vmatprep.subr.mxu0 0.0
      %490 = vmatpush1.msra.mxu0 0.0
      %491 = vmatprep.subr.mxu0 0.0
      %492 = vmatpush1.msra.mxu0 0.0
      %493 = vmatprep.subr.mxu0 0.0
      %494 = vmatpush1.msra.mxu0 %v470
      %495 = vmatprep.subr.mxu0 0.0
      %496 = vmatpush1.msra.mxu0 %v469
      %497 = vmatprep.subr.mxu0 0.0
      %498 = vmatpush1.msra.mxu0 %v468
      %499 = vmatprep.subr.mxu0 0.0
      %500 = vmatpush1.msra.mxu0 %v467
      %501 = vmatprep.subr.mxu0 0.0
      %502 = vmatpush1.msra.mxu0 %v466
      %503 = vmatprep.subr.mxu0 0.0
      %504 = vmatpush1.msra.mxu0 %v465
      %505 = vmatprep.subr.mxu0 0.0
      %506 = vmatpush1.msra.mxu0 %v464
      %507 = vmatprep.subr.mxu0 0.0
      %508 = vmatpush1.msra.mxu0 %v463
      %509 = vmatprep.subr.mxu0 0.0
      %510 = vmatpush2.msra.mxu0 0.0
      %511 = vmatprep.subr.mxu0 0.0
      %512 = vmatpush2.msra.mxu0 0.0
      %513 = vmatprep.subr.mxu0 0.0
      %514 = vmatpush2.msra.mxu0 0.0
      %515 = vmatprep.subr.mxu0 0.0
      %516 = vmatpush2.msra.mxu0 0.0
      %517 = vmatprep.subr.mxu0 0.0
      %518 = vmatpush2.msra.mxu0 0.0
      %519 = vmatprep.subr.mxu0 0.0
      %520 = vmatpush2.msra.mxu0 0.0
      %521 = vmatprep.subr.mxu0 0.0
      %522 = vmatpush2.msra.mxu0 0.0
      %523 = vmatprep.subr.mxu0 0.0
      %524 = vmatpush2.msra.mxu0 0.0
      %525 = vmatprep.subr.mxu0 0.0
      %526 = vmatpush2.msra.mxu0 0.0
      %527 = vmatprep.subr.mxu0 0.0
      %528 = vmatpush2.msra.mxu0 0.0
      %529 = vmatprep.subr.mxu0 0.0
      %530 = vmatpush2.msra.mxu0 0.0
      %531 = vmatprep.subr.mxu0 0.0
      %532 = vmatpush2.msra.mxu0 0.0
      %533 = vmatprep.subr.mxu0 0.0
      %534 = vmatpush2.msra.mxu0 0.0
      %535 = vmatprep.subr.mxu0 0.0
      %536 = vmatpush2.msra.mxu0 0.0
      %537 = vmatprep.subr.mxu0 0.0
      %538 = vmatpush2.msra.mxu0 0.0
      %539 = vmatprep.subr.mxu0 0.0
      %540 = vmatpush2.msra.mxu0 0.0
      %541 = vmatprep.mubr.f32.mxu0 0.0
      %542 = vmatmul.mubr.f32.gmra.mxu0 %v472
      %v543 = vpop.f32.mrf.mxu0
      %v544 = vadd.f32 0.0, %v543
      %v545 = vpop.f32.mrf.mxu0
      %546 = vmatprep.mubr.f32.mxu0 0.0
      %547 = vmatmul.mubr.f32.gmra.mxu0 %v475
      %v548 = vpop.f32.mrf.mxu0
      %v549 = vadd.f32 0.0, %v548
      %v550 = vpop.f32.mrf.mxu0
      %551 = vdwg.mxu0
      %v552 = vadd.f32 %v452, %v544
      %v553 = vadd.f32 %v457, %v549
      %554 = vst [vmem:[%s262] sm:$0xff] %v552
      %555 = vst [vmem:[%s262 + $0x8] sm:$0xff] %v553
      %v556 = vadd.f32 %v552, %v553
      %v557 = vrot.slane %v556, 4
      %v558 = vadd.f32 %v556, %v557
      %v559 = vrot.slane %v558, 2
      %v560 = vadd.f32 %v558, %v559
      %v561 = vrot.slane %v560, 1
      %v562 = vadd.f32 %v560, %v561
      %563 = vst [vmem:[%s265] sm:$0x1] %v562
      %v564 = vmul.f32 %v552, %v552
      %v565 = vmul.f32 %v553, %v553
      %v566 = vadd.f32 %v564, %v565
      %v567 = vrot.slane %v566, 4
      %v568 = vadd.f32 %v566, %v567
      %v569 = vrot.slane %v568, 2
      %v570 = vadd.f32 %v568, %v569
      %v571 = vrot.slane %v570, 1
      %v572 = vadd.f32 %v570, %v571
      %573 = vst [vmem:[%s268] sm:$0x1] %v572
      %p574 = scmp.lt.s32.totalorder %s18, 1
      %s575 = scalar_select %p574, %s18, 1
      %s576 = smul.addr %s575, 2
      %s577 = smul.addr %s576, 8
      %s578 = scalar_lea.vmem %s4, %s577
      %p579 = scmp.lt.s32.totalorder %s18, 1
      %s580 = scalar_select %p579, %s18, 1
      %s581 = scalar_lea.vmem %s5, %s580
      %p582 = scmp.lt.s32.totalorder %s18, 1
      %s583 = scalar_select %p582, %s18, 1
      %s584 = scalar_lea.vmem %s6, %s583
      // Predicated region
      $region37: #{double_conv_forward.3} parent=35 // pred_check
        %p585 = pneg %p125
      $region38: #{double_conv_forward.3} parent=35 // pred_check_branch
        %587 = sbr.rel (%p585) target = $region40
      $region39: #{double_conv_forward.3} parent=35 // pred_region
        _
      $region40: #{double_conv_forward.3} parent=35 // pred_fallthru
        _
      // Predicated region
      $region41: #{double_conv_forward.3} parent=35 // pred_check
        %p588 = pneg %p151
      $region42: #{double_conv_forward.3} parent=35 // pred_check_branch
        %590 = sbr.rel (%p588) target = $region44
      $region43: #{double_conv_forward.3} parent=35 // pred_region
        _
      $region44: #{double_conv_forward.3} parent=35 // pred_fallthru
        _
      // Predicated region
      $region45: #{double_conv_forward.3} parent=35 // pred_check
        %p591 = pneg %p177
      $region46: #{double_conv_forward.3} parent=35 // pred_check_branch
        %593 = sbr.rel (%p591) target = $region48
      $region47: #{double_conv_forward.3} parent=35 // pred_region
        _
      $region48: #{double_conv_forward.3} parent=35 // pred_fallthru
        _
    $region36: #{double_conv_forward.3} parent=5 // pred_fallthru
      _
    %p594 = scmp.le.s32.totalorder 2, %s13
    // Predicated region
    $region49: #{double_conv_forward.3} parent=5 // pred_check
      %p595 = pneg %p594
    $region50: #{double_conv_forward.3} parent=5 // pred_check_branch
      %597 = sbr.rel (%p595) target = $region52
    $region51: #{double_conv_forward.3} parent=5 // pred_region
      %s598 = ssub.s32 %s13, 2
      // Predicated region
      $region53: #{double_conv_forward.3} parent=51 // pred_check
        %p599 = pneg %p131
      $region54: #{double_conv_forward.3} parent=51 // pred_check_branch
        %601 = sbr.rel (%p599) target = $region56
      $region55: #{double_conv_forward.3} parent=51 // pred_region
        %p602 = scmp.lt.s32.totalorder %s19, 1
        %s603 = scalar_select %p602, %s19, 1
        %s604 = smul.addr %s603, 2
        %s605 = smul.addr %s604, 8
        %s606 = scalar_lea.vmem %s4, %s605
      $region56: #{double_conv_forward.3} parent=51 // pred_fallthru
        _
      // Predicated region
      $region57: #{double_conv_forward.3} parent=51 // pred_check
        %p607 = pneg %p157
      $region58: #{double_conv_forward.3} parent=51 // pred_check_branch
        %609 = sbr.rel (%p607) target = $region60
      $region59: #{double_conv_forward.3} parent=51 // pred_region
        %p610 = scmp.lt.s32.totalorder %s19, 1
        %s611 = scalar_select %p610, %s19, 1
        %s612 = scalar_lea.vmem %s5, %s611
      $region60: #{double_conv_forward.3} parent=51 // pred_fallthru
        _
      // Predicated region
      $region61: #{double_conv_forward.3} parent=51 // pred_check
        %p613 = pneg %p183
      $region62: #{double_conv_forward.3} parent=51 // pred_check_branch
        %615 = sbr.rel (%p613) target = $region64
      $region63: #{double_conv_forward.3} parent=51 // pred_region
        %p616 = scmp.lt.s32.totalorder %s19, 1
        %s617 = scalar_select %p616, %s19, 1
        %s618 = scalar_lea.vmem %s6, %s617
      $region64: #{double_conv_forward.3} parent=51 // pred_fallthru
        _
    $region52: #{double_conv_forward.3} parent=5 // pred_fallthru
      _
  $region6: #{double_conv_forward.3} parent=0 // loop_footer
    %s17 = sadd.s32 1, %s13
  $region7: #{double_conv_forward.3} parent=0 // loop_footer_branch
    %12 = sbr.rel target = $region3
  $region8: #{double_conv_forward.3} parent=0 // loop_exit
    _

// kernel: double_conv_forward.4
$region0: #{double_conv_forward.4}
  #allocation0 [shape = 'u32[]', space=smem, size = 0x4, offset = 0x4, fixed_abs, tag = 'smem constant byte address 0x4 - core index']
  #allocation1 [shape = 'u32[144,128]{1,0:T(1,128)}', space=vmem, size = 0x12000, scoped, tag = 'internal scratch']
  #allocation2 [shape = 'f32[24,128]{1,0:T(8,128)}', space=vmem, size = 0x3000, scoped, tag = 'scratch operand']
  %s0 = inlined_call_operand.vmem [shape: f32[2,16,128], index: 0, kind: input, shape index: {}]
  %s1 = inlined_call_operand.vmem [shape: f32[3,128,128], index: 1, kind: input, shape index: {}]
  %s2 = inlined_call_operand.vmem [shape: f32[1,128], index: 2, kind: input, shape index: {}]
  %s3 = inlined_call_operand.vmem [shape: f32[1,128], index: 3, kind: input, shape index: {}]
  %s4 = inlined_call_operand.vmem [shape: f32[2,16,128], index: 4, kind: output, shape index: {0}]
  %s5 = inlined_call_operand.vmem [shape: f32[2,1,128], index: 5, kind: output, shape index: {1}]
  %s6 = inlined_call_operand.vmem [shape: f32[2,1,128], index: 6, kind: output, shape index: {2}]
  %7 = xla_tuple %s4, %s5, %s6
  %s8 = sld [smem:[#allocation0]]
  $region65: #{double_conv_forward.4} parent=0
    _
  %s10 = ssub.s32 1, %s8
  %s11 = scalar_select 0, %s10, %s8
  loop: start=0, step=1, limit=4
  $region2: #{double_conv_forward.4} parent=0 // loop_pre_header
    _
  $region3: #{double_conv_forward.4} parent=0 // loop_header
    %s13 = sphi 0, %s17
    %p14 = scmp.ge.s32.totalorder %s13, 4
    %s23 = sphi 0, %s25
    %s26 = sphi 0, %s23
    %s27 = sphi 0, %s26
    %s43 = sphi 0, %s27
    %s47 = sphi 0, %s47
    %s49 = sphi 0, %s47
    %s50 = sphi 0, %s49
    %s64 = sphi 0, %s50
    %s68 = sphi 0, %s68
    %s70 = sphi 0, %s68
    %s71 = sphi 0, %s70
    %s85 = sphi 0, %s71
    %s89 = sphi 0, %s89
    %s91 = sphi 0, %s89
    %s92 = sphi 0, %s91
    %s106 = sphi 0, %s92
    %s112 = sphi 0, %s114
    %s115 = sphi 0, %s112
    %s116 = sphi 0, %s115
    %s132 = sphi 0, %s116
    %s138 = sphi 0, %s140
    %s141 = sphi 0, %s138
    %s142 = sphi 0, %s141
    %s158 = sphi 0, %s142
    %s164 = sphi 0, %s166
    %s167 = sphi 0, %s164
    %s168 = sphi 0, %s167
    %s184 = sphi 0, %s168
  $region4: #{double_conv_forward.4} parent=0 // loop_header_branch
    %16 = sbr.rel (%p14) target = $region8
  $region5: #{double_conv_forward.4} parent=0 // loop_body
    %s18 = ssub.s32 %s13, 1
    %s19 = ssub.s32 %s13, 2
    %s20 = sadd.s32 %s13, 1
    %s21 = ssub.s32 %s13, %s20
    %p22 = scmp.eq.s32.totalorder %s21, 0
    %s24 = sadd.s32 %s23, 1
    %s25 = scalar_select %p22, %s23, %s24
    %p28 = pneg %p22
    %p29 = scmp.eq.s32.totalorder %s13, 1
    %p30 = por %p28, %p29
    %p31 = scmp.ne.s32.totalorder %s23, %s26
    %p32 = scmp.eq.s32.totalorder %s13, 0
    %p33 = por %p31, %p32
    %p34 = scmp.ne.s32.totalorder %s23, %s26
    %p35 = scmp.eq.s32.totalorder %s18, 1
    %p36 = por %p34, %p35
    %p37 = scmp.ne.s32.totalorder %s26, %s27
    %p38 = scmp.eq.s32.totalorder %s18, 0
    %p39 = por %p37, %p38
    %p40 = scmp.ne.s32.totalorder %s26, %s27
    %p41 = scmp.eq.s32.totalorder %s19, 1
    %p42 = por %p40, %p41
    %p44 = scmp.ne.s32.totalorder %s27, %s43
    %p45 = scmp.eq.s32.totalorder %s19, 0
    %p46 = por %p44, %p45
    %s48 = sadd.s32 %s47, 1
    %p51 = scmp.eq.s32.totalorder %s13, 1
    %p52 = scmp.ne.s32.totalorder %s47, %s49
    %p53 = scmp.eq.s32.totalorder %s13, 0
    %p54 = por %p52, %p53
    %p55 = scmp.ne.s32.totalorder %s47, %s49
    %p56 = scmp.eq.s32.totalorder %s18, 1
    %p57 = por %p55, %p56
    %p58 = scmp.ne.s32.totalorder %s49, %s50
    %p59 = scmp.eq.s32.totalorder %s18, 0
    %p60 = por %p58, %p59
    %p61 = scmp.ne.s32.totalorder %s49, %s50
    %p62 = scmp.eq.s32.totalorder %s19, 1
    %p63 = por %p61, %p62
    %p65 = scmp.ne.s32.totalorder %s50, %s64
    %p66 = scmp.eq.s32.totalorder %s19, 0
    %p67 = por %p65, %p66
    %s69 = sadd.s32 %s68, 1
    %p72 = scmp.eq.s32.totalorder %s13, 1
    %p73 = scmp.ne.s32.totalorder %s68, %s70
    %p74 = scmp.eq.s32.totalorder %s13, 0
    %p75 = por %p73, %p74
    %p76 = scmp.ne.s32.totalorder %s68, %s70
    %p77 = scmp.eq.s32.totalorder %s18, 1
    %p78 = por %p76, %p77
    %p79 = scmp.ne.s32.totalorder %s70, %s71
    %p80 = scmp.eq.s32.totalorder %s18, 0
    %p81 = por %p79, %p80
    %p82 = scmp.ne.s32.totalorder %s70, %s71
    %p83 = scmp.eq.s32.totalorder %s19, 1
    %p84 = por %p82, %p83
    %p86 = scmp.ne.s32.totalorder %s71, %s85
    %p87 = scmp.eq.s32.totalorder %s19, 0
    %p88 = por %p86, %p87
    %s90 = sadd.s32 %s89, 1
    %p93 = scmp.eq.s32.totalorder %s13, 1
    %p94 = scmp.ne.s32.totalorder %s89, %s91
    %p95 = scmp.eq.s32.totalorder %s13, 0
    %p96 = por %p94, %p95
    %p97 = scmp.ne.s32.totalorder %s89, %s91
    %p98 = scmp.eq.s32.totalorder %s18, 1
    %p99 = por %p97, %p98
    %p100 = scmp.ne.s32.totalorder %s91, %s92
    %p101 = scmp.eq.s32.totalorder %s18, 0
    %p102 = por %p100, %p101
    %p103 = scmp.ne.s32.totalorder %s91, %s92
    %p104 = scmp.eq.s32.totalorder %s19, 1
    %p105 = por %p103, %p104
    %p107 = scmp.ne.s32.totalorder %s92, %s106
    %p108 = scmp.eq.s32.totalorder %s19, 0
    %p109 = por %p107, %p108
    %s110 = ssub.s32 %s13, %s20
    %p111 = scmp.eq.s32.totalorder %s110, 0
    %s113 = sadd.s32 %s112, 1
    %s114 = scalar_select %p111, %s112, %s113
    %p117 = pneg %p111
    %p118 = scmp.eq.s32.totalorder %s13, 1
    %p119 = por %p117, %p118
    %p120 = scmp.ne.s32.totalorder %s112, %s115
    %p121 = scmp.eq.s32.totalorder %s13, 0
    %p122 = por %p120, %p121
    %p123 = scmp.ne.s32.totalorder %s112, %s115
    %p124 = scmp.eq.s32.totalorder %s18, 1
    %p125 = por %p123, %p124
    %p126 = scmp.ne.s32.totalorder %s115, %s116
    %p127 = scmp.eq.s32.totalorder %s18, 0
    %p128 = por %p126, %p127
    %p129 = scmp.ne.s32.totalorder %s115, %s116
    %p130 = scmp.eq.s32.totalorder %s19, 1
    %p131 = por %p129, %p130
    %p133 = scmp.ne.s32.totalorder %s116, %s132
    %p134 = scmp.eq.s32.totalorder %s19, 0
    %p135 = por %p133, %p134
    %s136 = ssub.s32 %s13, %s20
    %p137 = scmp.eq.s32.totalorder %s136, 0
    %s139 = sadd.s32 %s138, 1
    %s140 = scalar_select %p137, %s138, %s139
    %p143 = pneg %p137
    %p144 = scmp.eq.s32.totalorder %s13, 1
    %p145 = por %p143, %p144
    %p146 = scmp.ne.s32.totalorder %s138, %s141
    %p147 = scmp.eq.s32.totalorder %s13, 0
    %p148 = por %p146, %p147
    %p149 = scmp.ne.s32.totalorder %s138, %s141
    %p150 = scmp.eq.s32.totalorder %s18, 1
    %p151 = por %p149, %p150
    %p152 = scmp.ne.s32.totalorder %s141, %s142
    %p153 = scmp.eq.s32.totalorder %s18, 0
    %p154 = por %p152, %p153
    %p155 = scmp.ne.s32.totalorder %s141, %s142
    %p156 = scmp.eq.s32.totalorder %s19, 1
    %p157 = por %p155, %p156
    %p159 = scmp.ne.s32.totalorder %s142, %s158
    %p160 = scmp.eq.s32.totalorder %s19, 0
    %p161 = por %p159, %p160
    %s162 = ssub.s32 %s13, %s20
    %p163 = scmp.eq.s32.totalorder %s162, 0
    %s165 = sadd.s32 %s164, 1
    %s166 = scalar_select %p163, %s164, %s165
    %p169 = pneg %p163
    %p170 = scmp.eq.s32.totalorder %s13, 1
    %p171 = por %p169, %p170
    %p172 = scmp.ne.s32.totalorder %s164, %s167
    %p173 = scmp.eq.s32.totalorder %s13, 0
    %p174 = por %p172, %p173
    %p175 = scmp.ne.s32.totalorder %s164, %s167
    %p176 = scmp.eq.s32.totalorder %s18, 1
    %p177 = por %p175, %p176
    %p178 = scmp.ne.s32.totalorder %s167, %s168
    %p179 = scmp.eq.s32.totalorder %s18, 0
    %p180 = por %p178, %p179
    %p181 = scmp.ne.s32.totalorder %s167, %s168
    %p182 = scmp.eq.s32.totalorder %s19, 1
    %p183 = por %p181, %p182
    %p185 = scmp.ne.s32.totalorder %s168, %s184
    %p186 = scmp.eq.s32.totalorder %s19, 0
    %p187 = por %p185, %p186
    %p188 = scmp.le.s32.totalorder 1, %s13
    %p189 = scmp.lt.s32.totalorder %s13, 3
    %p190 = pnand %p188, %p189
    %p191 = pneg %p190
    // Predicated region
    $region9: #{double_conv_forward.4} parent=5 // pred_check
      _
    $region10: #{double_conv_forward.4} parent=5 // pred_check_branch
      %193 = sbr.rel (%p190) target = $region12
    $region11: #{double_conv_forward.4} parent=5 // pred_region
      %s194 = ssub.s32 %s13, 1
      // Predicated region
      $region13: #{double_conv_forward.4} parent=11 // pred_check
        %p195 = pneg %p60
      $region14: #{double_conv_forward.4} parent=11 // pred_check_branch
        %197 = sbr.rel (%p195) target = $region16
      $region15: #{double_conv_forward.4} parent=11 // pred_region
        _
      $region16: #{double_conv_forward.4} parent=11 // pred_fallthru
        _
      // Predicated region
      $region17: #{double_conv_forward.4} parent=11 // pred_check
        %p198 = pneg %p81
      $region18: #{double_conv_forward.4} parent=11 // pred_check_branch
        %200 = sbr.rel (%p198) target = $region20
      $region19: #{double_conv_forward.4} parent=11 // pred_region
        _
      $region20: #{double_conv_forward.4} parent=11 // pred_fallthru
        _
      // Predicated region
      $region21: #{double_conv_forward.4} parent=11 // pred_check
        %p201 = pneg %p102
      $region22: #{double_conv_forward.4} parent=11 // pred_check_branch
        %203 = sbr.rel (%p201) target = $region24
      $region23: #{double_conv_forward.4} parent=11 // pred_region
        _
      $region24: #{double_conv_forward.4} parent=11 // pred_fallthru
        _
    $region12: #{double_conv_forward.4} parent=5 // pred_fallthru
      _
    %p204 = scmp.lt.s32.totalorder %s13, 2
    // Predicated region
    $region25: #{double_conv_forward.4} parent=5 // pred_check
      %p205 = pneg %p204
    $region26: #{double_conv_forward.4} parent=5 // pred_check_branch
      %207 = sbr.rel (%p205) target = $region28
    $region27: #{double_conv_forward.4} parent=5 // pred_region
      // Predicated region
      $region29: #{double_conv_forward.4} parent=27 // pred_check
        %p208 = pneg %p33
      $region30: #{double_conv_forward.4} parent=27 // pred_check_branch
        %210 = sbr.rel (%p208) target = $region32
      $region31: #{double_conv_forward.4} parent=27 // pred_region
        %p211 = scmp.lt.s32.totalorder %s13, 1
        %s212 = scalar_select %p211, %s13, 1
        %s213 = smul.addr %s212, 2
        %s214 = smul.addr %s213, 8
        %s215 = scalar_lea.vmem %s0, %s214
      $region32: #{double_conv_forward.4} parent=27 // pred_fallthru
        _
    $region28: #{double_conv_forward.4} parent=5 // pred_fallthru
      _
    %p216 = scmp.le.s32.totalorder 1, %s13
    %p217 = scmp.lt.s32.totalorder %s13, 3
    %p218 = pnand %p216, %p217
    %p219 = pneg %p218
    // Predicated region
    $region33: #{double_conv_forward.4} parent=5 // pred_check
      _
    $region34: #{double_conv_forward.4} parent=5 // pred_check_branch
      %221 = sbr.rel (%p218) target = $region36
    $region35: #{double_conv_forward.4} parent=5 // pred_region
      %s222 = ssub.s32 %s13, 1
      %p223 = scmp.lt.s32.totalorder %s18, 1
      %s224 = scalar_select %p223, %s18, 1
      %s225 = smul.addr %s224, 2
      %s226 = smul.addr %s225, 8
      %s227 = scalar_lea.vmem %s0, %s226
      %p228 = pneg %p39
      %p229 = pneg %p36
      %p230 = pneg %p60
      %p231 = pneg %p57
      %p232 = pneg %p81
      %p233 = pneg %p78
      %p234 = pneg %p102
      %p235 = pneg %p99
      %p236 = pneg %p128
      %p237 = pneg %p125
      %p238 = scmp.lt.s32.totalorder %s18, 1
      %s239 = scalar_select %p238, %s18, 1
      %s240 = smul.addr %s239, 2
      %s241 = smul.addr %s240, 8
      %s242 = scalar_lea.vmem %s4, %s241
      %p243 = pneg %p154
      %p244 = pneg %p151
      %p245 = scmp.lt.s32.totalorder %s18, 1
      %s246 = scalar_select %p245, %s18, 1
      %s247 = scalar_lea.vmem %s5, %s246
      %p248 = pneg %p180
      %p249 = pneg %p177
      %p250 = scmp.lt.s32.totalorder %s18, 1
      %s251 = scalar_select %p250, %s18, 1
      %s252 = scalar_lea.vmem %s6, %s251
      %p253 = scmp.lt.s32.totalorder %s18, 1
      %s254 = scalar_select %p253, %s18, 1
      %s255 = smul.addr %s254, 2
      %s256 = smul.addr %s255, 8
      %s257 = scalar_lea.vmem %s0, %s256
      %p258 = scmp.lt.s32.totalorder %s18, 1
      %s259 = scalar_select %p258, %s18, 1
      %s260 = smul.addr %s259, 2
      %s261 = smul.addr %s260, 8
      %s262 = scalar_lea.vmem %s4, %s261
      %p263 = scmp.lt.s32.totalorder %s18, 1
      %s264 = scalar_select %p263, %s18, 1
      %s265 = scalar_lea.vmem %s5, %s264
      %p266 = scmp.lt.s32.totalorder %s18, 1
      %s267 = scalar_select %p266, %s18, 1
      %s268 = scalar_lea.vmem %s6, %s267
      %v269 = vld [vmem:[%s257] sm:$0xff]
      %v270 = vld [vmem:[%s257 + $0x8] sm:$0xff]
      %v271 = vld [vmem:[%s2] sm:$0x1]
      %v273 = vlaneseq
      %v274 = vshrl.u32 %v273, 7
      %v275 = vsub.s32 0, %v274
      %v276 = vrot.slane %v271, %v275
      %v278 = vmul.f32 %v269, %v276
      %v279 = vmul.f32 %v270, %v276
      %v280 = vld [vmem:[%s3] sm:$0x1]
      %v282 = vlaneseq
      %v283 = vshrl.u32 %v282, 7
      %v284 = vsub.s32 0, %v283
      %v285 = vrot.slane %v280, %v284
      %v287 = vadd.f32 %v278, %v285
      %v288 = vadd.f32 %v279, %v285
      %v289 = vmax.f32 %v287, 0.0
      %v290 = vmax.f32 %v288, 0.0
      %291 = vst [vmem:[#allocation2] sm:$0x1] 0.0
      %292 = vst [vmem:[#allocation2 + $0x11] sm:$0x1] 0.0
      %293 = vst [vmem:[#allocation2 + $0x1] sm:$0xff] %v289
      %294 = vst [vmem:[#allocation2 + $0x9] sm:$0xff] %v290
      %v295 = vld [vmem:[#allocation2] sm:$0xff]
      %v296 = vld [vmem:[#allocation2 + $0x8] sm:$0xff]
      %v297 = vld [vmem:[%s1] sm:$0xff]
      %v298 = vld [vmem:[%s1 + $0x8] sm:$0xff]
      %v299 = vld [vmem:[%s1 + $0x10] sm:$0xff]
      %v300 = vld [vmem:[%s1 + $0x18] sm:$0xff]
      %v301 = vld [vmem:[%s1 + $0x20] sm:$0xff]
      %v302 = vld [vmem:[%s1 + $0x28] sm:$0xff]
      %v303 = vld [vmem:[%s1 + $0x30] sm:$0xff]
      %v304 = vld [vmem:[%s1 + $0x38] sm:$0xff]
      %v305 = vld [vmem:[%s1 + $0x40] sm:$0xff]
      %v306 = vld [vmem:[%s1 + $0x48] sm:$0xff]
      %v307 = vld [vmem:[%s1 + $0x50] sm:$0xff]
      %v308 = vld [vmem:[%s1 + $0x58] sm:$0xff]
      %v309 = vld [vmem:[%s1 + $0x60] sm:$0xff]
      %v310 = vld [vmem:[%s1 + $0x68] sm:$0xff]
      %v311 = vld [vmem:[%s1 + $0x70] sm:$0xff]
      %v312 = vld [vmem:[%s1 + $0x78] sm:$0xff]
      %v313 = vld [vmem:[#allocation2 + $0x1] sm:$0xff]
      %v314 = vld [vmem:[#allocation2 + $0x9] sm:$0xff]
      %s315 = scalar_lea.vmem %s1, 128
      %v316 = vld [vmem:[%s315] sm:$0xff]
      %v317 = vld [vmem:[%s315 + $0x8] sm:$0xff]
      %v318 = vld [vmem:[%s315 + $0x10] sm:$0xff]
      %v319 = vld [vmem:[%s315 + $0x18] sm:$0xff]
      %v320 = vld [vmem:[%s315 + $0x20] sm:$0xff]
      %v321 = vld [vmem:[%s315 + $0x28] sm:$0xff]
      %v322 = vld [vmem:[%s315 + $0x30] sm:$0xff]
      %v323 = vld [vmem:[%s315 + $0x38] sm:$0xff]
      %v324 = vld [vmem:[%s315 + $0x40] sm:$0xff]
      %v325 = vld [vmem:[%s315 + $0x48] sm:$0xff]
      %v326 = vld [vmem:[%s315 + $0x50] sm:$0xff]
      %v327 = vld [vmem:[%s315 + $0x58] sm:$0xff]
      %v328 = vld [vmem:[%s315 + $0x60] sm:$0xff]
      %v329 = vld [vmem:[%s315 + $0x68] sm:$0xff]
      %v330 = vld [vmem:[%s315 + $0x70] sm:$0xff]
      %v331 = vld [vmem:[%s315 + $0x78] sm:$0xff]
      %332 = vmatprep.subr.mxu0 0.0
      %333 = vmatpush1.msra.mxu0 %v331
      %334 = vmatprep.subr.mxu0 0.0
      %335 = vmatpush1.msra.mxu0 %v330
      %336 = vmatprep.subr.mxu0 0.0
      %337 = vmatpush1.msra.mxu0 %v329
      %338 = vmatprep.subr.mxu0 0.0
      %339 = vmatpush1.msra.mxu0 %v328
      %340 = vmatprep.subr.mxu0 0.0
      %341 = vmatpush1.msra.mxu0 %v327
      %342 = vmatprep.subr.mxu0 0.0
      %343 = vmatpush1.msra.mxu0 %v326
      %344 = vmatprep.subr.mxu0 0.0
      %345 = vmatpush1.msra.mxu0 %v325
      %346 = vmatprep.subr.mxu0 0.0
      %347 = vmatpush1.msra.mxu0 %v324
      %348 = vmatprep.subr.mxu0 0.0
      %349 = vmatpush1.msra.mxu0 %v323
      %350 = vmatprep.subr.mxu0 0.0
      %351 = vmatpush1.msra.mxu0 %v322
      %352 = vmatprep.subr.mxu0 0.0
      %353 = vmatpush1.msra.mxu0 %v321
      %354 = vmatprep.subr.mxu0 0.0
      %355 = vmatpush1.msra.mxu0 %v320
      %356 = vmatprep.subr.mxu0 0.0
      %357 = vmatpush1.msra.mxu0 %v319
      %358 = vmatprep.subr.mxu0 0.0
      %359 = vmatpush1.msra.mxu0 %v318
      %360 = vmatprep.subr.mxu0 0.0
      %361 = vmatpush1.msra.mxu0 %v317
      %362 = vmatprep.subr.mxu0 0.0
      %363 = vmatpush1.msra.mxu0 %v316
      %364 = vmatprep.subr.mxu0 0.0
      %365 = vmatpush2.msra.mxu0 0.0
      %366 = vmatprep.subr.mxu0 0.0
      %367 = vmatpush2.msra.mxu0 0.0
      %368 = vmatprep.subr.mxu0 0.0
      %369 = vmatpush2.msra.mxu0 0.0
      %370 = vmatprep.subr.mxu0 0.0
      %371 = vmatpush2.msra.mxu0 0.0
      %372 = vmatprep.subr.mxu0 0.0
      %373 = vmatpush2.msra.mxu0 0.0
      %374 = vmatprep.subr.mxu0 0.0
      %375 = vmatpush2.msra.mxu0 0.0
      %376 = vmatprep.subr.mxu0 0.0
      %377 = vmatpush2.msra.mxu0 0.0
      %378 = vmatprep.subr.mxu0 0.0
      %379 = vmatpush2.msra.mxu0 0.0
      %380 = vmatprep.subr.mxu0 0.0
      %381 = vmatpush2.msra.mxu0 0.0
      %382 = vmatprep.subr.mxu0 0.0
      %383 = vmatpush2.msra.mxu0 0.0
      %384 = vmatprep.subr.mxu0 0.0
      %385 = vmatpush2.msra.mxu0 0.0
      %386 = vmatprep.subr.mxu0 0.0
      %387 = vmatpush2.msra.mxu0 0.0
      %388 = vmatprep.subr.mxu0 0.0
      %389 = vmatpush2.msra.mxu0 0.0
      %390 = vmatprep.subr.mxu0 0.0
      %391 = vmatpush2.msra.mxu0 0.0
      %392 = vmatprep.subr.mxu0 0.0
      %393 = vmatpush2.msra.mxu0 0.0
      %394 = vmatprep.subr.mxu0 0.0
      %395 = vmatpush2.msra.mxu0 0.0
      %396 = vmatprep.mubr.f32.mxu0 0.0
      %397 = vmatmul.mubr.f32.gmra.mxu0 %v313
      %v398 = vpop.f32.mrf.mxu0
      %v399 = vadd.f32 0.0, %v398
      %v400 = vpop.f32.mrf.mxu0
      %401 = vmatprep.mubr.f32.mxu0 0.0
      %402 = vmatmul.mubr.f32.gmra.mxu0 %v314
      %v403 = vpop.f32.mrf.mxu0
      %v404 = vadd.f32 0.0, %v403
      %v405 = vpop.f32.mrf.mxu0
      %406 = vdwg.mxu0
      %407 = vmatprep.subr.mxu0 0.0
      %408 = vmatpush1.msra.mxu0 %v312
      %409 = vmatprep.subr.mxu0 0.0
      %410 = vmatpush1.msra.mxu0 %v311
      %411 = vmatprep.subr.mxu0 0.0
      %412 = vmatpush1.msra.mxu0 %v310
      %413 = vmatprep.subr.mxu0 0.0
      %414 = vmatpush1.msra.mxu0 %v309
      %415 = vmatprep.subr.mxu0 0.0
      %416 = vmatpush1.msra.mxu0 %v308
      %417 = vmatprep.subr.mxu0 0.0
      %418 = vmatpush1.msra.mxu0 %v307
      %419 = vmatprep.subr.mxu0 0.0
      %420 = vmatpush1.msra.mxu0 %v306
      %421 = vmatprep.subr.mxu0 0.0
      %422 = vmatpush1.msra.mxu0 %v305
      %423 = vmatprep.subr.mxu0 0.0
      %424 = vmatpush1.msra.mxu0 %v304
      %425 = vmatprep.subr.mxu0 0.0
      %426 = vmatpush1.msra.mxu0 %v303
      %427 = vmatprep.subr.mxu0 0.0
      %428 = vmatpush1.msra.mxu0 %v302
      %429 = vmatprep.subr.mxu0 0.0
      %430 = vmatpush1.msra.mxu0 %v301
      %431 = vmatprep.subr.mxu0 0.0
      %432 = vmatpush1.msra.mxu0 %v300
      %433 = vmatprep.subr.mxu0 0.0
      %434 = vmatpush1.msra.mxu0 %v299
      %435 = vmatprep.subr.mxu0 0.0
      %436 = vmatpush1.msra.mxu0 %v298
      %437 = vmatprep.subr.mxu0 0.0
      %438 = vmatpush1.msra.mxu0 %v297
      %439 = vmatprep.subr.mxu0 0.0
      %440 = vmatpush2.msra.mxu0 0.0
      %441 = vmatprep.subr.mxu0 0.0
      %442 = vmatpush2.msra.mxu0 0.0
      %443 = vmatprep.subr.mxu0 0.0
      %444 = vmatpush2.msra.mxu0 0.0
      %445 = vmatprep.subr.mxu0 0.0
      %446 = vmatpush2.msra.mxu0 0.0
      %447 = vmatprep.subr.mxu0 0.0
      %448 = vmatpush2.msra.mxu0 0.0
      %449 = vmatprep.subr.mxu0 0.0
      %450 = vmatpush2.msra.mxu0 0.0
      %451 = vmatprep.subr.mxu0 0.0
      %452 = vmatpush2.msra.mxu0 0.0
      %453 = vmatprep.subr.mxu0 0.0
      %454 = vmatpush2.msra.mxu0 0.0
      %455 = vmatprep.subr.mxu0 0.0
      %456 = vmatpush2.msra.mxu0 0.0
      %457 = vmatprep.subr.mxu0 0.0
      %458 = vmatpush2.msra.mxu0 0.0
      %459 = vmatprep.subr.mxu0 0.0
      %460 = vmatpush2.msra.mxu0 0.0
      %461 = vmatprep.subr.mxu0 0.0
      %462 = vmatpush2.msra.mxu0 0.0
      %463 = vmatprep.subr.mxu0 0.0
      %464 = vmatpush2.msra.mxu0 0.0
      %465 = vmatprep.subr.mxu0 0.0
      %466 = vmatpush2.msra.mxu0 0.0
      %467 = vmatprep.subr.mxu0 0.0
      %468 = vmatpush2.msra.mxu0 0.0
      %469 = vmatprep.subr.mxu0 0.0
      %470 = vmatpush2.msra.mxu0 0.0
      %471 = vmatprep.mubr.f32.mxu0 0.0
      %472 = vmatmul.mubr.f32.gmra.mxu0 %v295
      %v473 = vpop.f32.mrf.mxu0
      %v474 = vadd.f32 %v399, %v473
      %v475 = vpop.f32.mrf.mxu0
      %476 = vmatprep.mubr.f32.mxu0 0.0
      %477 = vmatmul.mubr.f32.gmra.mxu0 %v296
      %v478 = vpop.f32.mrf.mxu0
      %v479 = vadd.f32 %v404, %v478
      %v480 = vpop.f32.mrf.mxu0
      %481 = vdwg.mxu0
      %v482 = vld [vmem:[#allocation2 + $0x2] sm:$0xff]
      %v483 = vld [vmem:[#allocation2 + $0xa] sm:$0xff]
      %s484 = scalar_lea.vmem %s1, 256
      %v485 = vld [vmem:[%s484] sm:$0xff]
      %v486 = vld [vmem:[%s484 + $0x8] sm:$0xff]
      %v487 = vld [vmem:[%s484 + $0x10] sm:$0xff]
      %v488 = vld [vmem:[%s484 + $0x18] sm:$0xff]
      %v489 = vld [vmem:[%s484 + $0x20] sm:$0xff]
      %v490 = vld [vmem:[%s484 + $0x28] sm:$0xff]
      %v491 = vld [vmem:[%s484 + $0x30] sm:$0xff]
      %v492 = vld [vmem:[%s484 + $0x38] sm:$0xff]
      %v493 = vld [vmem:[%s484 + $0x40] sm:$0xff]
      %v494 = vld [vmem:[%s484 + $0x48] sm:$0xff]
      %v495 = vld [vmem:[%s484 + $0x50] sm:$0xff]
      %v496 = vld [vmem:[%s484 + $0x58] sm:$0xff]
      %v497 = vld [vmem:[%s484 + $0x60] sm:$0xff]
      %v498 = vld [vmem:[%s484 + $0x68] sm:$0xff]
      %v499 = vld [vmem:[%s484 + $0x70] sm:$0xff]
      %v500 = vld [vmem:[%s484 + $0x78] sm:$0xff]
      %501 = vmatprep.subr.mxu0 0.0
      %502 = vmatpush1.msra.mxu0 %v500
      %503 = vmatprep.subr.mxu0 0.0
      %504 = vmatpush1.msra.mxu0 %v499
      %505 = vmatprep.subr.mxu0 0.0
      %506 = vmatpush1.msra.mxu0 %v498
      %507 = vmatprep.subr.mxu0 0.0
      %508 = vmatpush1.msra.mxu0 %v497
      %509 = vmatprep.subr.mxu0 0.0
      %510 = vmatpush1.msra.mxu0 %v496
      %511 = vmatprep.subr.mxu0 0.0
      %512 = vmatpush1.msra.mxu0 %v495
      %513 = vmatprep.subr.mxu0 0.0
      %514 = vmatpush1.msra.mxu0 %v494
      %515 = vmatprep.subr.mxu0 0.0
      %516 = vmatpush1.msra.mxu0 %v493
      %517 = vmatprep.subr.mxu0 0.0
      %518 = vmatpush1.msra.mxu0 %v492
      %519 = vmatprep.subr.mxu0 0.0
      %520 = vmatpush1.msra.mxu0 %v491
      %521 = vmatprep.subr.mxu0 0.0
      %522 = vmatpush1.msra.mxu0 %v490
      %523 = vmatprep.subr.mxu0 0.0
      %524 = vmatpush1.msra.mxu0 %v489
      %525 = vmatprep.subr.mxu0 0.0
      %526 = vmatpush1.msra.mxu0 %v488
      %527 = vmatprep.subr.mxu0 0.0
      %528 = vmatpush1.msra.mxu0 %v487
      %529 = vmatprep.subr.mxu0 0.0
      %530 = vmatpush1.msra.mxu0 %v486
      %531 = vmatprep.subr.mxu0 0.0
      %532 = vmatpush1.msra.mxu0 %v485
      %533 = vmatprep.subr.mxu0 0.0
      %534 = vmatpush2.msra.mxu0 0.0
      %535 = vmatprep.subr.mxu0 0.0
      %536 = vmatpush2.msra.mxu0 0.0
      %537 = vmatprep.subr.mxu0 0.0
      %538 = vmatpush2.msra.mxu0 0.0
      %539 = vmatprep.subr.mxu0 0.0
      %540 = vmatpush2.msra.mxu0 0.0
      %541 = vmatprep.subr.mxu0 0.0
      %542 = vmatpush2.msra.mxu0 0.0
      %543 = vmatprep.subr.mxu0 0.0
      %544 = vmatpush2.msra.mxu0 0.0
      %545 = vmatprep.subr.mxu0 0.0
      %546 = vmatpush2.msra.mxu0 0.0
      %547 = vmatprep.subr.mxu0 0.0
      %548 = vmatpush2.msra.mxu0 0.0
      %549 = vmatprep.subr.mxu0 0.0
      %550 = vmatpush2.msra.mxu0 0.0
      %551 = vmatprep.subr.mxu0 0.0
      %552 = vmatpush2.msra.mxu0 0.0
      %553 = vmatprep.subr.mxu0 0.0
      %554 = vmatpush2.msra.mxu0 0.0
      %555 = vmatprep.subr.mxu0 0.0
      %556 = vmatpush2.msra.mxu0 0.0
      %557 = vmatprep.subr.mxu0 0.0
      %558 = vmatpush2.msra.mxu0 0.0
      %559 = vmatprep.subr.mxu0 0.0
      %560 = vmatpush2.msra.mxu0 0.0
      %561 = vmatprep.subr.mxu0 0.0
      %562 = vmatpush2.msra.mxu0 0.0
      %563 = vmatprep.subr.mxu0 0.0
      %564 = vmatpush2.msra.mxu0 0.0
      %565 = vmatprep.mubr.f32.mxu0 0.0
      %566 = vmatmul.mubr.f32.gmra.mxu0 %v482
      %v567 = vpop.f32.mrf.mxu0
      %v568 = vadd.f32 0.0, %v567
      %v569 = vpop.f32.mrf.mxu0
      %570 = vmatprep.mubr.f32.mxu0 0.0
      %571 = vmatmul.mubr.f32.gmra.mxu0 %v483
      %v572 = vpop.f32.mrf.mxu0
      %v573 = vadd.f32 0.0, %v572
      %v574 = vpop.f32.mrf.mxu0
      %575 = vdwg.mxu0
      %v576 = vadd.f32 %v474, %v568
      %v577 = vadd.f32 %v479, %v573
      %578 = vst [vmem:[%s262] sm:$0xff] %v576
      %579 = vst [vmem:[%s262 + $0x8] sm:$0xff] %v577
      %v580 = vadd.f32 %v576, %v577
      %v581 = vrot.slane %v580, 4
      %v582 = vadd.f32 %v580, %v581
      %v583 = vrot.slane %v582, 2
      %v584 = vadd.f32 %v582, %v583
      %v585 = vrot.slane %v584, 1
      %v586 = vadd.f32 %v584, %v585
      %587 = vst [vmem:[%s265] sm:$0x1] %v586
      %v588 = vmul.f32 %v576, %v576
      %v589 = vmul.f32 %v577, %v577
      %v590 = vadd.f32 %v588, %v589
      %v591 = vrot.slane %v590, 4
      %v592 = vadd.f32 %v590, %v591
      %v593 = vrot.slane %v592, 2
      %v594 = vadd.f32 %v592, %v593
      %v595 = vrot.slane %v594, 1
      %v596 = vadd.f32 %v594, %v595
      %597 = vst [vmem:[%s268] sm:$0x1] %v596
      %p598 = scmp.lt.s32.totalorder %s18, 1
      %s599 = scalar_select %p598, %s18, 1
      %s600 = smul.addr %s599, 2
      %s601 = smul.addr %s600, 8
      %s602 = scalar_lea.vmem %s4, %s601
      %p603 = scmp.lt.s32.totalorder %s18, 1
      %s604 = scalar_select %p603, %s18, 1
      %s605 = scalar_lea.vmem %s5, %s604
      %p606 = scmp.lt.s32.totalorder %s18, 1
      %s607 = scalar_select %p606, %s18, 1
      %s608 = scalar_lea.vmem %s6, %s607
      // Predicated region
      $region37: #{double_conv_forward.4} parent=35 // pred_check
        %p609 = pneg %p125
      $region38: #{double_conv_forward.4} parent=35 // pred_check_branch
        %611 = sbr.rel (%p609) target = $region40
      $region39: #{double_conv_forward.4} parent=35 // pred_region
        _
      $region40: #{double_conv_forward.4} parent=35 // pred_fallthru
        _
      // Predicated region
      $region41: #{double_conv_forward.4} parent=35 // pred_check
        %p612 = pneg %p151
      $region42: #{double_conv_forward.4} parent=35 // pred_check_branch
        %614 = sbr.rel (%p612) target = $region44
      $region43: #{double_conv_forward.4} parent=35 // pred_region
        _
      $region44: #{double_conv_forward.4} parent=35 // pred_fallthru
        _
      // Predicated region
      $region45: #{double_conv_forward.4} parent=35 // pred_check
        %p615 = pneg %p177
      $region46: #{double_conv_forward.4} parent=35 // pred_check_branch
        %617 = sbr.rel (%p615) target = $region48
      $region47: #{double_conv_forward.4} parent=35 // pred_region
        _
      $region48: #{double_conv_forward.4} parent=35 // pred_fallthru
        _
    $region36: #{double_conv_forward.4} parent=5 // pred_fallthru
      _
    %p618 = scmp.le.s32.totalorder 2, %s13
    // Predicated region
    $region49: #{double_conv_forward.4} parent=5 // pred_check
      %p619 = pneg %p618
    $region50: #{double_conv_forward.4} parent=5 // pred_check_branch
      %621 = sbr.rel (%p619) target = $region52
    $region51: #{double_conv_forward.4} parent=5 // pred_region
      %s622 = ssub.s32 %s13, 2
      // Predicated region
      $region53: #{double_conv_forward.4} parent=51 // pred_check
        %p623 = pneg %p131
      $region54: #{double_conv_forward.4} parent=51 // pred_check_branch
        %625 = sbr.rel (%p623) target = $region56
      $region55: #{double_conv_forward.4} parent=51 // pred_region
        %p626 = scmp.lt.s32.totalorder %s19, 1
        %s627 = scalar_select %p626, %s19, 1
        %s628 = smul.addr %s627, 2
        %s629 = smul.addr %s628, 8
        %s630 = scalar_lea.vmem %s4, %s629
      $region56: #{double_conv_forward.4} parent=51 // pred_fallthru
        _
      // Predicated region
      $region57: #{double_conv_forward.4} parent=51 // pred_check
        %p631 = pneg %p157
      $region58: #{double_conv_forward.4} parent=51 // pred_check_branch
        %633 = sbr.rel (%p631) target = $region60
      $region59: #{double_conv_forward.4} parent=51 // pred_region
        %p634 = scmp.lt.s32.totalorder %s19, 1
        %s635 = scalar_select %p634, %s19, 1
        %s636 = scalar_lea.vmem %s5, %s635
      $region60: #{double_conv_forward.4} parent=51 // pred_fallthru
        _
      // Predicated region
      $region61: #{double_conv_forward.4} parent=51 // pred_check
        %p637 = pneg %p183
      $region62: #{double_conv_forward.4} parent=51 // pred_check_branch
        %639 = sbr.rel (%p637) target = $region64
      $region63: #{double_conv_forward.4} parent=51 // pred_region
        %p640 = scmp.lt.s32.totalorder %s19, 1
        %s641 = scalar_select %p640, %s19, 1
        %s642 = scalar_lea.vmem %s6, %s641
      $region64: #{double_conv_forward.4} parent=51 // pred_fallthru
        _
    $region52: #{double_conv_forward.4} parent=5 // pred_fallthru
      _
  $region6: #{double_conv_forward.4} parent=0 // loop_footer
    %s17 = sadd.s32 1, %s13
  $region7: #{double_conv_forward.4} parent=0 // loop_footer_branch
    %12 = sbr.rel target = $region3
  $region8: #{double_conv_forward.4} parent=0 // loop_exit
    _

// kernel: double_conv_forward.5
$region0: #{double_conv_forward.5}
  #allocation0 [shape = 'u32[]', space=smem, size = 0x4, offset = 0x4, fixed_abs, tag = 'smem constant byte address 0x4 - core index']
  #allocation1 [shape = 'u32[144,128]{1,0:T(1,128)}', space=vmem, size = 0x12000, scoped, tag = 'internal scratch']
  %s0 = inlined_call_operand.vmem [shape: f32[32,128], index: 0, kind: input, shape index: {}]
  %s1 = inlined_call_operand.vmem [shape: f32[1,128], index: 1, kind: input, shape index: {}]
  %s2 = inlined_call_operand.vmem [shape: f32[1,128], index: 2, kind: input, shape index: {}]
  %s3 = inlined_call_operand.vmem [shape: f32[32,128], index: 3, kind: output, shape index: {}]
  %s4 = sld [smem:[#allocation0]]
  $region22: #{double_conv_forward.5} parent=0
    _
  %s6 = ssub.s32 1, %s4
  %s7 = scalar_select 0, %s6, %s4
  // Predicated region
  $region2: #{double_conv_forward.5} parent=0 // pred_check
    _
  $region3: #{double_conv_forward.5} parent=0 // pred_check_branch
    %9 = sbr.rel (0) target = $region5
  $region4: #{double_conv_forward.5} parent=0 // pred_region
    _
  $region5: #{double_conv_forward.5} parent=0 // pred_fallthru
    _
  // Predicated region
  $region6: #{double_conv_forward.5} parent=0 // pred_check
    _
  $region7: #{double_conv_forward.5} parent=0 // pred_check_branch
    %11 = sbr.rel (0) target = $region9
  $region8: #{double_conv_forward.5} parent=0 // pred_region
    _
  $region9: #{double_conv_forward.5} parent=0 // pred_fallthru
    _
  // Predicated region
  $region10: #{double_conv_forward.5} parent=0 // pred_check
    _
  $region11: #{double_conv_forward.5} parent=0 // pred_check_branch
    %13 = sbr.rel (0) target = $region13
  $region12: #{double_conv_forward.5} parent=0 // pred_region
    _
  $region13: #{double_conv_forward.5} parent=0 // pred_fallthru
    _
  %v14 = vld [vmem:[%s0] sm:$0xff]
  %v15 = vld [vmem:[%s0 + $0x8] sm:$0xff]
  %v16 = vld [vmem:[%s0 + $0x10] sm:$0xff]
  %v17 = vld [vmem:[%s0 + $0x18] sm:$0xff]
  %v18 = vld [vmem:[%s1] sm:$0x1]
  %v20 = vlaneseq
  %v21 = vshrl.u32 %v20, 7
  %v22 = vsub.s32 0, %v21
  %v23 = vrot.slane %v18, %v22
  %v25 = vmul.f32 %v14, %v23
  %v26 = vmul.f32 %v15, %v23
  %v27 = vmul.f32 %v16, %v23
  %v28 = vmul.f32 %v17, %v23
  %v29 = vld [vmem:[%s2] sm:$0x1]
  %v31 = vlaneseq
  %v32 = vshrl.u32 %v31, 7
  %v33 = vsub.s32 0, %v32
  %v34 = vrot.slane %v29, %v33
  %v36 = vadd.f32 %v25, %v34
  %v37 = vadd.f32 %v26, %v34
  %v38 = vadd.f32 %v27, %v34
  %v39 = vadd.f32 %v28, %v34
  %v40 = vmax.f32 %v36, 0.0
  %v41 = vmax.f32 %v37, 0.0
  %v42 = vmax.f32 %v38, 0.0
  %v43 = vmax.f32 %v39, 0.0
  %44 = vst [vmem:[%s3] sm:$0xff] %v40
  %45 = vst [vmem:[%s3 + $0x8] sm:$0xff] %v41
  %46 = vst [vmem:[%s3 + $0x10] sm:$0xff] %v42
  %47 = vst [vmem:[%s3 + $0x18] sm:$0xff] %v43
  // Predicated region
  $region14: #{double_conv_forward.5} parent=0 // pred_check
    _
  $region15: #{double_conv_forward.5} parent=0 // pred_check_branch
    %49 = sbr.rel (0) target = $region17
  $region16: #{double_conv_forward.5} parent=0 // pred_region
    _
  $region17: #{double_conv_forward.5} parent=0 // pred_fallthru
    _
  // Predicated region
  $region18: #{double_conv_forward.5} parent=0 // pred_check
    _
  $region19: #{double_conv_forward.5} parent=0 // pred_check_branch
    %51 = sbr.rel (0) target = $region21
  $region20: #{double_conv_forward.5} parent=0 // pred_region
    _
  $region21: #{double_conv_forward.5} parent=0 // pred_fallthru
    _

</llo_original>
